<compile_context>
chip_gen: v5e
topology: v5e:2x2
jax: 0.10.0
libtpu: 0.0.40
codegen_flags: <defaults>
</compile_context>

<pallas_src>
import functools

import jax
import jax.numpy as jnp
from jax.experimental import pallas as pl
from jax.experimental.pallas import tpu as pltpu

EPS = 1e-5  # torch.nn.LayerNorm default


def _layernorm(x, w, b):
    mean = jnp.mean(x, axis=-1, keepdims=True)
    xc = x - mean
    var = jnp.mean(xc * xc, axis=-1, keepdims=True)
    return xc * jax.lax.rsqrt(var + EPS) * w + b


def _mic_kernel(src_ref,
                w1_ref, b1_ref,          # self.conv[0]        flattened (conv_k*C, C)
                wiso_ref, biso_ref,      # self.isometric_conv flattened (iso_k*C, C)
                wt_ref, bt_ref,          # self.conv_trans[0]  (conv_k, C_in, C_out)
                nw_ref, nb_ref,          # self.norm (shared by both uses)
                wm_ref, bm_ref,          # self.merge (1x1 Conv2d)
                n1w_ref, n1b_ref,        # self.norm1
                wc1_ref, bc1_ref,        # self.conv1 (1x1)
                wc2_ref, bc2_ref,        # self.conv2 (1x1)
                n2w_ref, n2b_ref,        # self.norm2
                wpt_ref, bpt_ref,        # projection, pre-transposed (c_out, C)/(c_out, 1)
                o_ref,                   # (1, c_out, L) lane-dense output block
                scr_ref,                 # shared VMEM scratch (pad buffer / upsample buffer)
                *, L, C, c_out, conv_k, iso_k, decomp_k, L_out, Li):
    f32, bf16 = jnp.float32, jnp.bfloat16
    pad_c = conv_k // 2
    pad_d = (decomp_k - 1) // 2
    total = conv_k * L_out            # padded length consumed by the strided conv

    x = src_ref[0]                                        # (L, C) of this batch element

    # ---- series_decomp(decomp_k): moving average with replicate padding ----
    front = jnp.broadcast_to(x[0:1, :], (pad_d, C))
    end = jnp.broadcast_to(x[L - 1:L, :], (pad_d, C))
    padded = jnp.concatenate([front, x, end], axis=0)     # (L + 2*pad_d, C)
    mov = padded[0:L, :]
    for j in range(1, decomp_k):
        mov = mov + padded[j:j + L, :]
    mov = mov * (1.0 / decomp_k)
    s = x - mov                                           # seasonal part (trend unused)

    # ---- self.conv: Conv1d(k=conv_k, pad=conv_k//2, stride=conv_k) ---------
    # Stage the zero-padded sequence in VMEM, gather the conv_k taps with
    # strided reads, and fold all taps into a single big-K matmul.
    n_take = min(L, total - pad_c)
    parts = []
    if pad_c > 0:
        parts.append(jnp.zeros((pad_c, C), f32))
    parts.append(s[0:n_take, :])
    tail = total - pad_c - n_take
    if tail > 0:
        parts.append(jnp.zeros((tail, C), f32))
    scr_ref[0:total, :] = parts[0] if len(parts) == 1 else jnp.concatenate(parts, axis=0)
    win = jnp.concatenate(
        [scr_ref[pl.ds(tap, L_out, stride=conv_k), :] for tap in range(conv_k)],
        axis=1).astype(bf16)                              # (L_out, conv_k*C)
    x1 = jnp.tanh(jnp.dot(win, w1_ref[...], preferred_element_type=f32) + b1_ref[...])
    # dropout(p=0.05) == identity in eval mode

    # ---- isometric conv on cat([zeros, x1]) (causal) as one big-K matmul ---
    xc = jnp.concatenate([jnp.zeros((L_out - 1, C), f32), x1], axis=0)   # (2*L_out-1, C)
    iwin = jnp.concatenate([xc[t:t + Li, :] for t in range(iso_k)],
                           axis=1).astype(bf16)           # (Li, iso_k*C)
    xi = jnp.tanh(jnp.dot(iwin, wiso_ref[...], preferred_element_type=f32) + biso_ref[...])
    nw, nb = nw_ref[...], nb_ref[...]
    xi = _layernorm(xi + xi, nw, nb)                      # reference: self.norm((x + x)...)

    # ---- conv_trans: ConvTranspose1d(k=stride=conv_k); strided interleave --
    # scr_ref is dead after `win`, so reuse it as the upsample buffer.
    xib = xi.astype(bf16)
    for tap in range(conv_k):
        scr_ref[pl.ds(tap, Li, stride=conv_k), :] = jnp.dot(
            xib, wt_ref[tap], preferred_element_type=f32)
    xt = jnp.tanh(scr_ref[0:L, :] + bt_ref[...])          # keep first L steps
    cc = _layernorm(xt + s, nw, nb)

    # ---- MIC merge (1x1) + feed-forward ------------------------------------
    mg = jnp.dot(cc.astype(bf16), wm_ref[...], preferred_element_type=f32) + bm_ref[...]
    y = _layernorm(mg, n1w_ref[...], n1b_ref[...])
    y = jnp.dot(y.astype(bf16), wc1_ref[...], preferred_element_type=f32) + bc1_ref[...]
    y = jnp.dot(y.astype(bf16), wc2_ref[...], preferred_element_type=f32) + bc2_ref[...]
    out_mic = _layernorm(mg + y, n2w_ref[...], n2b_ref[...])

    # ---- SeasonalPrediction.projection, stored lane-dense as (c_out, L) ----
    o_ref[0] = jnp.dot(wpt_ref[...], jnp.transpose(out_mic),
                       preferred_element_type=f32) + bpt_ref[...]


def seasonal_prediction(src, params, *, conv_k, iso_k, decomp_k):
    B, L, C = src.shape
    c_out = params["wp"].shape[-1]
    H = params["wc1"].shape[-1]
    pad_c = conv_k // 2
    T = L + 2 * pad_c
    L_out = (T - conv_k) // conv_k + 1          # downsampled length
    Li = 2 * L_out - iso_k                      # isometric-conv output length
    assert decomp_k % 2 == 1, "decomp kernel must be odd"
    assert Li > 0 and conv_k * Li >= L, "isometric kernel inconsistent with seq len"

    f32, bf16 = jnp.float32, jnp.bfloat16
    # MXU operands in bf16 (f32 accumulation); biases / LayerNorm params stay f32.
    w1f = params["w1"].reshape(conv_k * C, C).astype(bf16)
    wisof = params["wiso"].reshape(iso_k * C, C).astype(bf16)
    wt = params["wt"].astype(bf16)
    wm = params["wm"].astype(bf16)
    wc1 = params["wc1"].astype(bf16)
    wc2 = params["wc2"].astype(bf16)
    wpt = jnp.transpose(params["wp"]).astype(f32)     # (c_out, C)
    bpt = jnp.transpose(params["bp"]).astype(f32)     # (c_out, 1)

    args = [src,
            w1f, params["b1"], wisof, params["biso"], wt, params["bt"],
            params["nw"], params["nb"], wm, params["bm"],
            params["n1w"], params["n1b"], wc1, params["bc1"],
            wc2, params["bc2"], params["n2w"], params["n2b"],
            wpt, bpt]

    def resident(a):
        nd = a.ndim

        def idx(b):
            return (0,) * nd
        return pl.BlockSpec(a.shape, idx)

    in_specs = ([pl.BlockSpec((1, L, C), lambda b: (b, 0, 0))]
                + [resident(a) for a in args[1:]])
    out_specs = pl.BlockSpec((1, c_out, L), lambda b: (b, 0, 0))

    flops = 2 * B * C * (L_out * conv_k * C + Li * iso_k * C + conv_k * Li * C
                         + L * C + 2 * L * H + L * c_out)
    transcendentals = B * (L_out + Li + L) * C
    bytes_accessed = (int(src.size) * 4 + B * L * c_out * 4
                      + sum(int(a.size) * a.dtype.itemsize for a in args[1:]))

    kernel = functools.partial(_mic_kernel, L=L, C=C, c_out=c_out,
                               conv_k=conv_k, iso_k=iso_k, decomp_k=decomp_k,
                               L_out=L_out, Li=Li)

    # One shared scratch, reused for im2col padding and conv_trans interleave.
    scr_rows = max(conv_k * L_out, conv_k * Li)

    out_t = pl.pallas_call(
        kernel,
        out_shape=jax.ShapeDtypeStruct((B, c_out, L), f32),
        grid=(B,),
        in_specs=in_specs,
        out_specs=out_specs,
        scratch_shapes=[pltpu.VMEM((scr_rows, C), f32)],
        compiler_params=pltpu.CompilerParams(
            dimension_semantics=("parallel",),          # batch on both TCs (v7x)
            vmem_limit_bytes=32 * 1024 * 1024),
        cost_estimate=pl.CostEstimate(flops=flops,
                                      transcendentals=transcendentals,
                                      bytes_accessed=bytes_accessed),
    )(*args)
    # Kernel emits (B, c_out, L) so stores are lane-dense along L; give back (B, L, c_out).
    return jnp.transpose(out_t, (0, 2, 1))


def init_params(key, C, c_out, conv_k, iso_k):
    ks = jax.random.split(key, 14)

    def u(k, shape, fan_in):
        bound = 1.0 / (fan_in ** 0.5)
        return jax.random.uniform(k, shape, jnp.float32, -bound, bound)

    H = 4 * C
    return {
        # Conv1d(C,C,k) weight (C,C,k) stored as (k, C_in, C_out) = weight[:,:,tap].T
        "w1": u(ks[0], (conv_k, C, C), C * conv_k),
        "b1": u(ks[1], (1, C), C * conv_k),
        "wiso": u(ks[2], (iso_k, C, C), C * iso_k),
        "biso": u(ks[3], (1, C), C * iso_k),
        # ConvTranspose1d weight (C_in,C_out,k) stored as (k, C_in, C_out)
        "wt": u(ks[4], (conv_k, C, C), C * conv_k),
        "bt": u(ks[5], (1, C), C * conv_k),
        # LayerNorms: torch default init (weight=1, bias=0)
        "nw": jnp.ones((1, C), jnp.float32), "nb": jnp.zeros((1, C), jnp.float32),
        "n1w": jnp.ones((1, C), jnp.float32), "n1b": jnp.zeros((1, C), jnp.float32),
        "n2w": jnp.ones((1, C), jnp.float32), "n2b": jnp.zeros((1, C), jnp.float32),
        # merge Conv2d(C,C,(1,1)) weight stored as (C_in, C_out)
        "wm": u(ks[6], (C, C), C),
        "bm": u(ks[7], (1, C), C),
        # conv1 / conv2 (1x1 Conv1d) stored as (in, out)
        "wc1": u(ks[8], (C, H), C),
        "bc1": u(ks[9], (1, H), C),
        "wc2": u(ks[10], (H, C), H),
        "bc2": u(ks[11], (1, C), H),
        # projection Linear(C, c_out) stored as (C, c_out)
        "wp": u(ks[12], (C, c_out), C),
        "bp": u(ks[13], (1, c_out), C),
    }


if __name__ == "__main__":
    B, L, C, c_out = 2, 16, 32, 1
    conv_k, decomp_k = 2, 3
    # isometric kernel = downsampled length (L//conv_k + 1), as MICN configs imply
    iso_k = L // conv_k + 1            # = 9

    key = jax.random.PRNGKey(0)
    kx, kp = jax.random.split(key)
    dec = jax.random.normal(kx, (B, L, C), jnp.float32)
    params = init_params(kp, C, c_out, conv_k, iso_k)

    out = seasonal_prediction(dec, params, conv_k=conv_k, iso_k=iso_k, decomp_k=decomp_k)
    out = jax.block_until_ready(out)
    assert out.shape == (B, L, c_out)
    assert bool(jnp.all(jnp.isfinite(out)))
    print("KERNEL_OK")
</pallas_src>

<mosaic_0001>
module attributes {stable_mosaic.version = 11 : i64} {
  func.func @_mic_kernel(%arg0: i32, %arg1: memref<1x16x32xf32, #tpu.memory_space<vmem>>, %arg2: memref<64x32xbf16, #tpu.memory_space<vmem>>, %arg3: memref<1x32xf32, #tpu.memory_space<vmem>>, %arg4: memref<288x32xbf16, #tpu.memory_space<vmem>>, %arg5: memref<1x32xf32, #tpu.memory_space<vmem>>, %arg6: memref<2x32x32xbf16, #tpu.memory_space<vmem>>, %arg7: memref<1x32xf32, #tpu.memory_space<vmem>>, %arg8: memref<1x32xf32, #tpu.memory_space<vmem>>, %arg9: memref<1x32xf32, #tpu.memory_space<vmem>>, %arg10: memref<32x32xbf16, #tpu.memory_space<vmem>>, %arg11: memref<1x32xf32, #tpu.memory_space<vmem>>, %arg12: memref<1x32xf32, #tpu.memory_space<vmem>>, %arg13: memref<1x32xf32, #tpu.memory_space<vmem>>, %arg14: memref<32x128xbf16, #tpu.memory_space<vmem>>, %arg15: memref<1x128xf32, #tpu.memory_space<vmem>>, %arg16: memref<128x32xbf16, #tpu.memory_space<vmem>>, %arg17: memref<1x32xf32, #tpu.memory_space<vmem>>, %arg18: memref<1x32xf32, #tpu.memory_space<vmem>>, %arg19: memref<1x32xf32, #tpu.memory_space<vmem>>, %arg20: memref<1x32xf32, #tpu.memory_space<vmem>>, %arg21: memref<1x1xf32, #tpu.memory_space<vmem>>, %arg22: memref<1x1x16xf32, #tpu.memory_space<vmem>>, %arg23: memref<18x32xf32, #tpu.memory_space<vmem>>) attributes {dimension_semantics = [#tpu.dimension_semantics<parallel>], iteration_bounds = array<i64: 2>, scalar_prefetch = 0 : i64, scratch_operands = 1 : i64, tpu.core_type = #tpu.core_type<tc>, window_params = [{transform_indices = @transform_0, window_bounds = array<i64: 1, 16, 32>}, {pipeline_mode = #tpu.pipeline_mode<synchronous>, transform_indices = @transform_1, window_bounds = array<i64: 64, 32>}, {pipeline_mode = #tpu.pipeline_mode<synchronous>, transform_indices = @transform_2, window_bounds = array<i64: 1, 32>}, {pipeline_mode = #tpu.pipeline_mode<synchronous>, transform_indices = @transform_3, window_bounds = array<i64: 288, 32>}, {pipeline_mode = #tpu.pipeline_mode<synchronous>, transform_indices = @transform_4, window_bounds = array<i64: 1, 32>}, {pipeline_mode = #tpu.pipeline_mode<synchronous>, transform_indices = @transform_5, window_bounds = array<i64: 2, 32, 32>}, {pipeline_mode = #tpu.pipeline_mode<synchronous>, transform_indices = @transform_6, window_bounds = array<i64: 1, 32>}, {pipeline_mode = #tpu.pipeline_mode<synchronous>, transform_indices = @transform_7, window_bounds = array<i64: 1, 32>}, {pipeline_mode = #tpu.pipeline_mode<synchronous>, transform_indices = @transform_8, window_bounds = array<i64: 1, 32>}, {pipeline_mode = #tpu.pipeline_mode<synchronous>, transform_indices = @transform_9, window_bounds = array<i64: 32, 32>}, {pipeline_mode = #tpu.pipeline_mode<synchronous>, transform_indices = @transform_10, window_bounds = array<i64: 1, 32>}, {pipeline_mode = #tpu.pipeline_mode<synchronous>, transform_indices = @transform_11, window_bounds = array<i64: 1, 32>}, {pipeline_mode = #tpu.pipeline_mode<synchronous>, transform_indices = @transform_12, window_bounds = array<i64: 1, 32>}, {pipeline_mode = #tpu.pipeline_mode<synchronous>, transform_indices = @transform_13, window_bounds = array<i64: 32, 128>}, {pipeline_mode = #tpu.pipeline_mode<synchronous>, transform_indices = @transform_14, window_bounds = array<i64: 1, 128>}, {pipeline_mode = #tpu.pipeline_mode<synchronous>, transform_indices = @transform_15, window_bounds = array<i64: 128, 32>}, {pipeline_mode = #tpu.pipeline_mode<synchronous>, transform_indices = @transform_16, window_bounds = array<i64: 1, 32>}, {pipeline_mode = #tpu.pipeline_mode<synchronous>, transform_indices = @transform_17, window_bounds = array<i64: 1, 32>}, {pipeline_mode = #tpu.pipeline_mode<synchronous>, transform_indices = @transform_18, window_bounds = array<i64: 1, 32>}, {pipeline_mode = #tpu.pipeline_mode<synchronous>, transform_indices = @transform_19, window_bounds = array<i64: 1, 32>}, {pipeline_mode = #tpu.pipeline_mode<synchronous>, transform_indices = @transform_20, window_bounds = array<i64: 1, 1>}, {transform_indices = @transform_21, window_bounds = array<i64: 1, 1, 16>}]} {
    %c0 = arith.constant 0 : index
    %c0_0 = arith.constant 0 : index
    %c0_1 = arith.constant 0 : index
    %0 = vector.load %arg1[%c0, %c0_0, %c0_1] : memref<1x16x32xf32, #tpu.memory_space<vmem>>, vector<1x16x32xf32>
    %1 = vector.shape_cast %0 : vector<1x16x32xf32> to vector<16x32xf32>
    %2 = vector.extract_strided_slice %1 {offsets = [0, 0], sizes = [1, 32], strides = [1, 1]} : vector<16x32xf32> to vector<1x32xf32>
    %3 = vector.extract_strided_slice %1 {offsets = [15, 0], sizes = [1, 32], strides = [1, 1]} : vector<16x32xf32> to vector<1x32xf32>
    %4 = tpu.concatenate %2, %1, %3 in 0 : vector<1x32xf32>, vector<16x32xf32>, vector<1x32xf32> -> vector<18x32xf32>
    %5 = vector.extract_strided_slice %4 {offsets = [0, 0], sizes = [16, 32], strides = [1, 1]} : vector<18x32xf32> to vector<16x32xf32>
    %6 = vector.extract_strided_slice %4 {offsets = [1, 0], sizes = [16, 32], strides = [1, 1]} : vector<18x32xf32> to vector<16x32xf32>
    %7 = arith.addf %5, %6 : vector<16x32xf32>
    %8 = vector.extract_strided_slice %4 {offsets = [2, 0], sizes = [16, 32], strides = [1, 1]} : vector<18x32xf32> to vector<16x32xf32>
    %9 = arith.addf %7, %8 : vector<16x32xf32>
    %cst = arith.constant 0.333333343 : f32
    %10 = vector.broadcast %cst : f32 to vector<16x32xf32>
    %11 = arith.mulf %9, %10 : vector<16x32xf32>
    %12 = arith.subf %1, %11 : vector<16x32xf32>
    %cst_2 = arith.constant 0.000000e+00 : f32
    %13 = vector.broadcast %cst_2 : f32 to vector<1x32xf32>
    %cst_3 = arith.constant 0.000000e+00 : f32
    %14 = vector.broadcast %cst_3 : f32 to vector<1x32xf32>
    %15 = tpu.concatenate %13, %12, %14 in 0 : vector<1x32xf32>, vector<16x32xf32>, vector<1x32xf32> -> vector<18x32xf32>
    %c0_4 = arith.constant 0 : index
    %c0_5 = arith.constant 0 : index
    %16 = vector.load %arg23[%c0_4, %c0_5] : memref<18x32xf32, #tpu.memory_space<vmem>>, vector<18x32xf32>
    tpu.vector_store %arg23[%c0_4, %c0_5], %15 {strides = array<i32>} : memref<18x32xf32, #tpu.memory_space<vmem>>, vector<18x32xf32>,
    %c0_6 = arith.constant 0 : index
    %c0_7 = arith.constant 0 : index
    %17 = tpu.strided_load %arg23[%c0_6, %c0_7] {strides = array<i32: 2, 1>} : memref<18x32xf32, #tpu.memory_space<vmem>>, vector<9x32xf32>
    %c1 = arith.constant 1 : index
    %c0_8 = arith.constant 0 : index
    %18 = tpu.strided_load %arg23[%c1, %c0_8] {strides = array<i32: 2, 1>} : memref<18x32xf32, #tpu.memory_space<vmem>>, vector<9x32xf32>
    %19 = tpu.concatenate %17, %18 in 1 : vector<9x32xf32>, vector<9x32xf32> -> vector<9x64xf32>
    %20 = arith.truncf %19 : vector<9x64xf32> to vector<9x64xbf16>
    %c0_9 = arith.constant 0 : index
    %c0_10 = arith.constant 0 : index
    %21 = vector.load %arg2[%c0_9, %c0_10] : memref<64x32xbf16, #tpu.memory_space<vmem>>, vector<64x32xbf16>
    %cst_11 = arith.constant dense<0.000000e+00> : vector<9x32xf32>
    %22 = tpu.matmul %20, %21, %cst_11 {dimension_numbers = #tpu.dot_dimension_numbers<[1], [0], [0], [1], [0, 0, 1, 1], [], []>} : vector<9x64xbf16>, vector<64x32xbf16>, vector<9x32xf32> -> vector<9x32xf32>
    %c0_12 = arith.constant 0 : index
    %c0_13 = arith.constant 0 : index
    %23 = vector.load %arg3[%c0_12, %c0_13] : memref<1x32xf32, #tpu.memory_space<vmem>>, vector<1x32xf32>
    %24 = vector.broadcast %23 : vector<1x32xf32> to vector<9x32xf32>
    %25 = arith.addf %22, %24 : vector<9x32xf32>
    %26 = math.tanh %25 : vector<9x32xf32>
    %cst_14 = arith.constant 0.000000e+00 : f32
    %27 = vector.broadcast %cst_14 : f32 to vector<8x32xf32>
    %28 = tpu.concatenate %27, %26 in 0 : vector<8x32xf32>, vector<9x32xf32> -> vector<17x32xf32>
    %29 = vector.extract_strided_slice %28 {offsets = [0, 0], sizes = [9, 32], strides = [1, 1]} : vector<17x32xf32> to vector<9x32xf32>
    %30 = vector.extract_strided_slice %28 {offsets = [1, 0], sizes = [9, 32], strides = [1, 1]} : vector<17x32xf32> to vector<9x32xf32>
    %31 = vector.extract_strided_slice %28 {offsets = [2, 0], sizes = [9, 32], strides = [1, 1]} : vector<17x32xf32> to vector<9x32xf32>
    %32 = vector.extract_strided_slice %28 {offsets = [3, 0], sizes = [9, 32], strides = [1, 1]} : vector<17x32xf32> to vector<9x32xf32>
    %33 = vector.extract_strided_slice %28 {offsets = [4, 0], sizes = [9, 32], strides = [1, 1]} : vector<17x32xf32> to vector<9x32xf32>
    %34 = vector.extract_strided_slice %28 {offsets = [5, 0], sizes = [9, 32], strides = [1, 1]} : vector<17x32xf32> to vector<9x32xf32>
    %35 = vector.extract_strided_slice %28 {offsets = [6, 0], sizes = [9, 32], strides = [1, 1]} : vector<17x32xf32> to vector<9x32xf32>
    %36 = vector.extract_strided_slice %28 {offsets = [7, 0], sizes = [9, 32], strides = [1, 1]} : vector<17x32xf32> to vector<9x32xf32>
    %37 = vector.extract_strided_slice %28 {offsets = [8, 0], sizes = [9, 32], strides = [1, 1]} : vector<17x32xf32> to vector<9x32xf32>
    %38 = tpu.concatenate %29, %30, %31, %32, %33, %34, %35, %36, %37 in 1 : vector<9x32xf32>, vector<9x32xf32>, vector<9x32xf32>, vector<9x32xf32>, vector<9x32xf32>, vector<9x32xf32>, vector<9x32xf32>, vector<9x32xf32>, vector<9x32xf32> -> vector<9x288xf32>
    %39 = arith.truncf %38 : vector<9x288xf32> to vector<9x288xbf16>
    %c0_15 = arith.constant 0 : index
    %c0_16 = arith.constant 0 : index
    %40 = vector.load %arg4[%c0_15, %c0_16] : memref<288x32xbf16, #tpu.memory_space<vmem>>, vector<288x32xbf16>
    %cst_17 = arith.constant dense<0.000000e+00> : vector<9x32xf32>
    %41 = tpu.matmul %39, %40, %cst_17 {dimension_numbers = #tpu.dot_dimension_numbers<[1], [0], [0], [1], [0, 0, 1, 1], [], []>} : vector<9x288xbf16>, vector<288x32xbf16>, vector<9x32xf32> -> vector<9x32xf32>
    %c0_18 = arith.constant 0 : index
    %c0_19 = arith.constant 0 : index
    %42 = vector.load %arg5[%c0_18, %c0_19] : memref<1x32xf32, #tpu.memory_space<vmem>>, vector<1x32xf32>
    %43 = vector.broadcast %42 : vector<1x32xf32> to vector<9x32xf32>
    %44 = arith.addf %41, %43 : vector<9x32xf32>
    %45 = math.tanh %44 : vector<9x32xf32>
    %c0_20 = arith.constant 0 : index
    %c0_21 = arith.constant 0 : index
    %46 = vector.load %arg8[%c0_20, %c0_21] : memref<1x32xf32, #tpu.memory_space<vmem>>, vector<1x32xf32>
    %c0_22 = arith.constant 0 : index
    %c0_23 = arith.constant 0 : index
    %47 = vector.load %arg9[%c0_22, %c0_23] : memref<1x32xf32, #tpu.memory_space<vmem>>, vector<1x32xf32>
    %48 = arith.addf %45, %45 : vector<9x32xf32>
    %cst_24 = arith.constant dense<0.000000e+00> : vector<9xf32>
    %49 = vector.multi_reduction <add>, %48, %cst_24 [1] : vector<9x32xf32> to vector<9xf32>
    %50 = vector.shape_cast %49 : vector<9xf32> to vector<9x1xf32>
    %cst_25 = arith.constant 3.200000e+01 : f32
    %51 = vector.broadcast %cst_25 : f32 to vector<9x1xf32>
    %52 = arith.divf %50, %51 : vector<9x1xf32>
    %53 = vector.broadcast %52 : vector<9x1xf32> to vector<9x32xf32>
    %54 = arith.subf %48, %53 : vector<9x32xf32>
    %55 = arith.mulf %54, %54 : vector<9x32xf32>
    %cst_26 = arith.constant dense<0.000000e+00> : vector<9xf32>
    %56 = vector.multi_reduction <add>, %55, %cst_26 [1] : vector<9x32xf32> to vector<9xf32>
    %57 = vector.shape_cast %56 : vector<9xf32> to vector<9x1xf32>
    %cst_27 = arith.constant 3.200000e+01 : f32
    %58 = vector.broadcast %cst_27 : f32 to vector<9x1xf32>
    %59 = arith.divf %57, %58 : vector<9x1xf32>
    %cst_28 = arith.constant 9.99999974E-6 : f32
    %60 = vector.broadcast %cst_28 : f32 to vector<9x1xf32>
    %61 = arith.addf %59, %60 : vector<9x1xf32>
    %62 = math.rsqrt %61 : vector<9x1xf32>
    %63 = vector.broadcast %62 : vector<9x1xf32> to vector<9x32xf32>
    %64 = arith.mulf %54, %63 : vector<9x32xf32>
    %65 = vector.broadcast %46 : vector<1x32xf32> to vector<9x32xf32>
    %66 = arith.mulf %64, %65 : vector<9x32xf32>
    %67 = vector.broadcast %47 : vector<1x32xf32> to vector<9x32xf32>
    %68 = arith.addf %66, %67 : vector<9x32xf32>
    %69 = arith.truncf %68 : vector<9x32xf32> to vector<9x32xbf16>
    %c0_29 = arith.constant 0 : index
    %c0_30 = arith.constant 0 : index
    %c0_31 = arith.constant 0 : index
    %70 = vector.load %arg6[%c0_29, %c0_30, %c0_31] : memref<2x32x32xbf16, #tpu.memory_space<vmem>>, vector<1x32x32xbf16>
    %71 = vector.shape_cast %70 : vector<1x32x32xbf16> to vector<32x32xbf16>
    %cst_32 = arith.constant dense<0.000000e+00> : vector<9x32xf32>
    %72 = tpu.matmul %69, %71, %cst_32 {dimension_numbers = #tpu.dot_dimension_numbers<[1], [0], [0], [1], [0, 0, 1, 1], [], []>} : vector<9x32xbf16>, vector<32x32xbf16>, vector<9x32xf32> -> vector<9x32xf32>
    %c0_33 = arith.constant 0 : index
    %c0_34 = arith.constant 0 : index
    %73 = tpu.strided_load %arg23[%c0_33, %c0_34] {strides = array<i32: 2, 1>} : memref<18x32xf32, #tpu.memory_space<vmem>>, vector<9x32xf32>
    tpu.strided_store %arg23[%c0_33, %c0_34], %72 {strides = array<i32: 2, 1>} : memref<18x32xf32, #tpu.memory_space<vmem>>, vector<9x32xf32>
    %c1_35 = arith.constant 1 : index
    %c0_36 = arith.constant 0 : index
    %c0_37 = arith.constant 0 : index
    %74 = vector.load %arg6[%c1_35, %c0_36, %c0_37] : memref<2x32x32xbf16, #tpu.memory_space<vmem>>, vector<1x32x32xbf16>
    %75 = vector.shape_cast %74 : vector<1x32x32xbf16> to vector<32x32xbf16>
    %cst_38 = arith.constant dense<0.000000e+00> : vector<9x32xf32>
    %76 = tpu.matmul %69, %75, %cst_38 {dimension_numbers = #tpu.dot_dimension_numbers<[1], [0], [0], [1], [0, 0, 1, 1], [], []>} : vector<9x32xbf16>, vector<32x32xbf16>, vector<9x32xf32> -> vector<9x32xf32>
    %c1_39 = arith.constant 1 : index
    %c0_40 = arith.constant 0 : index
    %77 = tpu.strided_load %arg23[%c1_39, %c0_40] {strides = array<i32: 2, 1>} : memref<18x32xf32, #tpu.memory_space<vmem>>, vector<9x32xf32>
    tpu.strided_store %arg23[%c1_39, %c0_40], %76 {strides = array<i32: 2, 1>} : memref<18x32xf32, #tpu.memory_space<vmem>>, vector<9x32xf32>
    %c0_41 = arith.constant 0 : index
    %c0_42 = arith.constant 0 : index
    %78 = vector.load %arg23[%c0_41, %c0_42] : memref<18x32xf32, #tpu.memory_space<vmem>>, vector<16x32xf32>
    %c0_43 = arith.constant 0 : index
    %c0_44 = arith.constant 0 : index
    %79 = vector.load %arg7[%c0_43, %c0_44] : memref<1x32xf32, #tpu.memory_space<vmem>>, vector<1x32xf32>
    %80 = vector.broadcast %79 : vector<1x32xf32> to vector<16x32xf32>
    %81 = arith.addf %78, %80 : vector<16x32xf32>
    %82 = math.tanh %81 : vector<16x32xf32>
    %83 = arith.addf %82, %12 : vector<16x32xf32>
    %cst_45 = arith.constant dense<0.000000e+00> : vector<16xf32>
    %84 = vector.multi_reduction <add>, %83, %cst_45 [1] : vector<16x32xf32> to vector<16xf32>
    %85 = vector.shape_cast %84 : vector<16xf32> to vector<16x1xf32>
    %cst_46 = arith.constant 3.200000e+01 : f32
    %86 = vector.broadcast %cst_46 : f32 to vector<16x1xf32>
    %87 = arith.divf %85, %86 : vector<16x1xf32>
    %88 = vector.broadcast %87 : vector<16x1xf32> to vector<16x32xf32>
    %89 = arith.subf %83, %88 : vector<16x32xf32>
    %90 = arith.mulf %89, %89 : vector<16x32xf32>
    %cst_47 = arith.constant dense<0.000000e+00> : vector<16xf32>
    %91 = vector.multi_reduction <add>, %90, %cst_47 [1] : vector<16x32xf32> to vector<16xf32>
    %92 = vector.shape_cast %91 : vector<16xf32> to vector<16x1xf32>
    %cst_48 = arith.constant 3.200000e+01 : f32
    %93 = vector.broadcast %cst_48 : f32 to vector<16x1xf32>
    %94 = arith.divf %92, %93 : vector<16x1xf32>
    %cst_49 = arith.constant 9.99999974E-6 : f32
    %95 = vector.broadcast %cst_49 : f32 to vector<16x1xf32>
    %96 = arith.addf %94, %95 : vector<16x1xf32>
    %97 = math.rsqrt %96 : vector<16x1xf32>
    %98 = vector.broadcast %97 : vector<16x1xf32> to vector<16x32xf32>
    %99 = arith.mulf %89, %98 : vector<16x32xf32>
    %100 = vector.broadcast %46 : vector<1x32xf32> to vector<16x32xf32>
    %101 = arith.mulf %99, %100 : vector<16x32xf32>
    %102 = vector.broadcast %47 : vector<1x32xf32> to vector<16x32xf32>
    %103 = arith.addf %101, %102 : vector<16x32xf32>
    %104 = arith.truncf %103 : vector<16x32xf32> to vector<16x32xbf16>
    %c0_50 = arith.constant 0 : index
    %c0_51 = arith.constant 0 : index
    %105 = vector.load %arg10[%c0_50, %c0_51] : memref<32x32xbf16, #tpu.memory_space<vmem>>, vector<32x32xbf16>
    %cst_52 = arith.constant dense<0.000000e+00> : vector<16x32xf32>
    %106 = tpu.matmul %104, %105, %cst_52 {dimension_numbers = #tpu.dot_dimension_numbers<[1], [0], [0], [1], [0, 0, 1, 1], [], []>} : vector<16x32xbf16>, vector<32x32xbf16>, vector<16x32xf32> -> vector<16x32xf32>
    %c0_53 = arith.constant 0 : index
    %c0_54 = arith.constant 0 : index
    %107 = vector.load %arg11[%c0_53, %c0_54] : memref<1x32xf32, #tpu.memory_space<vmem>>, vector<1x32xf32>
    %108 = vector.broadcast %107 : vector<1x32xf32> to vector<16x32xf32>
    %109 = arith.addf %106, %108 : vector<16x32xf32>
    %c0_55 = arith.constant 0 : index
    %c0_56 = arith.constant 0 : index
    %110 = vector.load %arg12[%c0_55, %c0_56] : memref<1x32xf32, #tpu.memory_space<vmem>>, vector<1x32xf32>
    %c0_57 = arith.constant 0 : index
    %c0_58 = arith.constant 0 : index
    %111 = vector.load %arg13[%c0_57, %c0_58] : memref<1x32xf32, #tpu.memory_space<vmem>>, vector<1x32xf32>
    %cst_59 = arith.constant dense<0.000000e+00> : vector<16xf32>
    %112 = vector.multi_reduction <add>, %109, %cst_59 [1] : vector<16x32xf32> to vector<16xf32>
    %113 = vector.shape_cast %112 : vector<16xf32> to vector<16x1xf32>
    %cst_60 = arith.constant 3.200000e+01 : f32
    %114 = vector.broadcast %cst_60 : f32 to vector<16x1xf32>
    %115 = arith.divf %113, %114 : vector<16x1xf32>
    %116 = vector.broadcast %115 : vector<16x1xf32> to vector<16x32xf32>
    %117 = arith.subf %109, %116 : vector<16x32xf32>
    %118 = arith.mulf %117, %117 : vector<16x32xf32>
    %cst_61 = arith.constant dense<0.000000e+00> : vector<16xf32>
    %119 = vector.multi_reduction <add>, %118, %cst_61 [1] : vector<16x32xf32> to vector<16xf32>
    %120 = vector.shape_cast %119 : vector<16xf32> to vector<16x1xf32>
    %cst_62 = arith.constant 3.200000e+01 : f32
    %121 = vector.broadcast %cst_62 : f32 to vector<16x1xf32>
    %122 = arith.divf %120, %121 : vector<16x1xf32>
    %cst_63 = arith.constant 9.99999974E-6 : f32
    %123 = vector.broadcast %cst_63 : f32 to vector<16x1xf32>
    %124 = arith.addf %122, %123 : vector<16x1xf32>
    %125 = math.rsqrt %124 : vector<16x1xf32>
    %126 = vector.broadcast %125 : vector<16x1xf32> to vector<16x32xf32>
    %127 = arith.mulf %117, %126 : vector<16x32xf32>
    %128 = vector.broadcast %110 : vector<1x32xf32> to vector<16x32xf32>
    %129 = arith.mulf %127, %128 : vector<16x32xf32>
    %130 = vector.broadcast %111 : vector<1x32xf32> to vector<16x32xf32>
    %131 = arith.addf %129, %130 : vector<16x32xf32>
    %132 = arith.truncf %131 : vector<16x32xf32> to vector<16x32xbf16>
    %c0_64 = arith.constant 0 : index
    %c0_65 = arith.constant 0 : index
    %133 = vector.load %arg14[%c0_64, %c0_65] : memref<32x128xbf16, #tpu.memory_space<vmem>>, vector<32x128xbf16>
    %cst_66 = arith.constant dense<0.000000e+00> : vector<16x128xf32>
    %134 = tpu.matmul %132, %133, %cst_66 {dimension_numbers = #tpu.dot_dimension_numbers<[1], [0], [0], [1], [0, 0, 1, 1], [], []>} : vector<16x32xbf16>, vector<32x128xbf16>, vector<16x128xf32> -> vector<16x128xf32>
    %c0_67 = arith.constant 0 : index
    %c0_68 = arith.constant 0 : index
    %135 = vector.load %arg15[%c0_67, %c0_68] : memref<1x128xf32, #tpu.memory_space<vmem>>, vector<1x128xf32>
    %136 = vector.broadcast %135 : vector<1x128xf32> to vector<16x128xf32>
    %137 = arith.addf %134, %136 : vector<16x128xf32>
    %138 = arith.truncf %137 : vector<16x128xf32> to vector<16x128xbf16>
    %c0_69 = arith.constant 0 : index
    %c0_70 = arith.constant 0 : index
    %139 = vector.load %arg16[%c0_69, %c0_70] : memref<128x32xbf16, #tpu.memory_space<vmem>>, vector<128x32xbf16>
    %cst_71 = arith.constant dense<0.000000e+00> : vector<16x32xf32>
    %140 = tpu.matmul %138, %139, %cst_71 {dimension_numbers = #tpu.dot_dimension_numbers<[1], [0], [0], [1], [0, 0, 1, 1], [], []>} : vector<16x128xbf16>, vector<128x32xbf16>, vector<16x32xf32> -> vector<16x32xf32>
    %c0_72 = arith.constant 0 : index
    %c0_73 = arith.constant 0 : index
    %141 = vector.load %arg17[%c0_72, %c0_73] : memref<1x32xf32, #tpu.memory_space<vmem>>, vector<1x32xf32>
    %142 = vector.broadcast %141 : vector<1x32xf32> to vector<16x32xf32>
    %143 = arith.addf %140, %142 : vector<16x32xf32>
    %144 = arith.addf %109, %143 : vector<16x32xf32>
    %c0_74 = arith.constant 0 : index
    %c0_75 = arith.constant 0 : index
    %145 = vector.load %arg18[%c0_74, %c0_75] : memref<1x32xf32, #tpu.memory_space<vmem>>, vector<1x32xf32>
    %c0_76 = arith.constant 0 : index
    %c0_77 = arith.constant 0 : index
    %146 = vector.load %arg19[%c0_76, %c0_77] : memref<1x32xf32, #tpu.memory_space<vmem>>, vector<1x32xf32>
    %cst_78 = arith.constant dense<0.000000e+00> : vector<16xf32>
    %147 = vector.multi_reduction <add>, %144, %cst_78 [1] : vector<16x32xf32> to vector<16xf32>
    %148 = vector.shape_cast %147 : vector<16xf32> to vector<16x1xf32>
    %cst_79 = arith.constant 3.200000e+01 : f32
    %149 = vector.broadcast %cst_79 : f32 to vector<16x1xf32>
    %150 = arith.divf %148, %149 : vector<16x1xf32>
    %151 = vector.broadcast %150 : vector<16x1xf32> to vector<16x32xf32>
    %152 = arith.subf %144, %151 : vector<16x32xf32>
    %153 = arith.mulf %152, %152 : vector<16x32xf32>
    %cst_80 = arith.constant dense<0.000000e+00> : vector<16xf32>
    %154 = vector.multi_reduction <add>, %153, %cst_80 [1] : vector<16x32xf32> to vector<16xf32>
    %155 = vector.shape_cast %154 : vector<16xf32> to vector<16x1xf32>
    %cst_81 = arith.constant 3.200000e+01 : f32
    %156 = vector.broadcast %cst_81 : f32 to vector<16x1xf32>
    %157 = arith.divf %155, %156 : vector<16x1xf32>
    %cst_82 = arith.constant 9.99999974E-6 : f32
    %158 = vector.broadcast %cst_82 : f32 to vector<16x1xf32>
    %159 = arith.addf %157, %158 : vector<16x1xf32>
    %160 = math.rsqrt %159 : vector<16x1xf32>
    %161 = vector.broadcast %160 : vector<16x1xf32> to vector<16x32xf32>
    %162 = arith.mulf %152, %161 : vector<16x32xf32>
    %163 = vector.broadcast %145 : vector<1x32xf32> to vector<16x32xf32>
    %164 = arith.mulf %162, %163 : vector<16x32xf32>
    %165 = vector.broadcast %146 : vector<1x32xf32> to vector<16x32xf32>
    %166 = arith.addf %164, %165 : vector<16x32xf32>
    %c0_83 = arith.constant 0 : index
    %c0_84 = arith.constant 0 : index
    %167 = vector.load %arg20[%c0_83, %c0_84] : memref<1x32xf32, #tpu.memory_space<vmem>>, vector<1x32xf32>
    %168 = tpu.transpose %166, [1, 0] : vector<16x32xf32> -> vector<32x16xf32>
    %cst_85 = arith.constant dense<0.000000e+00> : vector<1x16xf32>
    %169 = tpu.matmul %167, %168, %cst_85 {dimension_numbers = #tpu.dot_dimension_numbers<[1], [0], [0], [1], [0, 0, 1, 1], [], []>} : vector<1x32xf32>, vector<32x16xf32>, vector<1x16xf32> -> vector<1x16xf32>
    %c0_86 = arith.constant 0 : index
    %c0_87 = arith.constant 0 : index
    %170 = vector.load %arg21[%c0_86, %c0_87] : memref<1x1xf32, #tpu.memory_space<vmem>>, vector<1x1xf32>
    %171 = vector.broadcast %170 : vector<1x1xf32> to vector<1x16xf32>
    %172 = arith.addf %169, %171 : vector<1x16xf32>
    %c0_88 = arith.constant 0 : index
    %c0_89 = arith.constant 0 : index
    %c0_90 = arith.constant 0 : index
    %173 = vector.load %arg22[%c0_88, %c0_89, %c0_90] : memref<1x1x16xf32, #tpu.memory_space<vmem>>, vector<1x1x16xf32>
    %174 = vector.shape_cast %173 : vector<1x1x16xf32> to vector<1x16xf32>
    %175 = vector.shape_cast %172 : vector<1x16xf32> to vector<1x1x16xf32>
    tpu.vector_store %arg22[%c0_88, %c0_89, %c0_90], %175 {strides = array<i32>} : memref<1x1x16xf32, #tpu.memory_space<vmem>>, vector<1x1x16xf32>,
    return
  }
  func.func @transform_0(%arg0: i32) -> (i32, i32, i32) {
    %c0_i32 = arith.constant 0 : i32
    %c0_i32_0 = arith.constant 0 : i32
    %c0_i32_1 = arith.constant 0 : i32
    return %arg0, %c0_i32, %c0_i32_0 : i32, i32, i32
  }
  func.func @transform_1(%arg0: i32) -> (i32, i32) {
    %c0_i32 = arith.constant 0 : i32
    %c0_i32_0 = arith.constant 0 : i32
    %c0_i32_1 = arith.constant 0 : i32
    return %c0_i32, %c0_i32_0 : i32, i32
  }
  func.func @transform_2(%arg0: i32) -> (i32, i32) {
    %c0_i32 = arith.constant 0 : i32
    %c0_i32_0 = arith.constant 0 : i32
    %c0_i32_1 = arith.constant 0 : i32
    return %c0_i32, %c0_i32_0 : i32, i32
  }
  func.func @transform_3(%arg0: i32) -> (i32, i32) {
    %c0_i32 = arith.constant 0 : i32
    %c0_i32_0 = arith.constant 0 : i32
    %c0_i32_1 = arith.constant 0 : i32
    return %c0_i32, %c0_i32_0 : i32, i32
  }
  func.func @transform_4(%arg0: i32) -> (i32, i32) {
    %c0_i32 = arith.constant 0 : i32
    %c0_i32_0 = arith.constant 0 : i32
    %c0_i32_1 = arith.constant 0 : i32
    return %c0_i32, %c0_i32_0 : i32, i32
  }
  func.func @transform_5(%arg0: i32) -> (i32, i32, i32) {
    %c0_i32 = arith.constant 0 : i32
    %c0_i32_0 = arith.constant 0 : i32
    %c0_i32_1 = arith.constant 0 : i32
    %c0_i32_2 = arith.constant 0 : i32
    return %c0_i32, %c0_i32_0, %c0_i32_1 : i32, i32, i32
  }
  func.func @transform_6(%arg0: i32) -> (i32, i32) {
    %c0_i32 = arith.constant 0 : i32
    %c0_i32_0 = arith.constant 0 : i32
    %c0_i32_1 = arith.constant 0 : i32
    return %c0_i32, %c0_i32_0 : i32, i32
  }
  func.func @transform_7(%arg0: i32) -> (i32, i32) {
    %c0_i32 = arith.constant 0 : i32
    %c0_i32_0 = arith.constant 0 : i32
    %c0_i32_1 = arith.constant 0 : i32
    return %c0_i32, %c0_i32_0 : i32, i32
  }
  func.func @transform_8(%arg0: i32) -> (i32, i32) {
    %c0_i32 = arith.constant 0 : i32
    %c0_i32_0 = arith.constant 0 : i32
    %c0_i32_1 = arith.constant 0 : i32
    return %c0_i32, %c0_i32_0 : i32, i32
  }
  func.func @transform_9(%arg0: i32) -> (i32, i32) {
    %c0_i32 = arith.constant 0 : i32
    %c0_i32_0 = arith.constant 0 : i32
    %c0_i32_1 = arith.constant 0 : i32
    return %c0_i32, %c0_i32_0 : i32, i32
  }
  func.func @transform_10(%arg0: i32) -> (i32, i32) {
    %c0_i32 = arith.constant 0 : i32
    %c0_i32_0 = arith.constant 0 : i32
    %c0_i32_1 = arith.constant 0 : i32
    return %c0_i32, %c0_i32_0 : i32, i32
  }
  func.func @transform_11(%arg0: i32) -> (i32, i32) {
    %c0_i32 = arith.constant 0 : i32
    %c0_i32_0 = arith.constant 0 : i32
    %c0_i32_1 = arith.constant 0 : i32
    return %c0_i32, %c0_i32_0 : i32, i32
  }
  func.func @transform_12(%arg0: i32) -> (i32, i32) {
    %c0_i32 = arith.constant 0 : i32
    %c0_i32_0 = arith.constant 0 : i32
    %c0_i32_1 = arith.constant 0 : i32
    return %c0_i32, %c0_i32_0 : i32, i32
  }
  func.func @transform_13(%arg0: i32) -> (i32, i32) {
    %c0_i32 = arith.constant 0 : i32
    %c0_i32_0 = arith.constant 0 : i32
    %c0_i32_1 = arith.constant 0 : i32
    return %c0_i32, %c0_i32_0 : i32, i32
  }
  func.func @transform_14(%arg0: i32) -> (i32, i32) {
    %c0_i32 = arith.constant 0 : i32
    %c0_i32_0 = arith.constant 0 : i32
    %c0_i32_1 = arith.constant 0 : i32
    return %c0_i32, %c0_i32_0 : i32, i32
  }
  func.func @transform_15(%arg0: i32) -> (i32, i32) {
    %c0_i32 = arith.constant 0 : i32
    %c0_i32_0 = arith.constant 0 : i32
    %c0_i32_1 = arith.constant 0 : i32
    return %c0_i32, %c0_i32_0 : i32, i32
  }
  func.func @transform_16(%arg0: i32) -> (i32, i32) {
    %c0_i32 = arith.constant 0 : i32
    %c0_i32_0 = arith.constant 0 : i32
    %c0_i32_1 = arith.constant 0 : i32
    return %c0_i32, %c0_i32_0 : i32, i32
  }
  func.func @transform_17(%arg0: i32) -> (i32, i32) {
    %c0_i32 = arith.constant 0 : i32
    %c0_i32_0 = arith.constant 0 : i32
    %c0_i32_1 = arith.constant 0 : i32
    return %c0_i32, %c0_i32_0 : i32, i32
  }
  func.func @transform_18(%arg0: i32) -> (i32, i32) {
    %c0_i32 = arith.constant 0 : i32
    %c0_i32_0 = arith.constant 0 : i32
    %c0_i32_1 = arith.constant 0 : i32
    return %c0_i32, %c0_i32_0 : i32, i32
  }
  func.func @transform_19(%arg0: i32) -> (i32, i32) {
    %c0_i32 = arith.constant 0 : i32
    %c0_i32_0 = arith.constant 0 : i32
    %c0_i32_1 = arith.constant 0 : i32
    return %c0_i32, %c0_i32_0 : i32, i32
  }
  func.func @transform_20(%arg0: i32) -> (i32, i32) {
    %c0_i32 = arith.constant 0 : i32
    %c0_i32_0 = arith.constant 0 : i32
    %c0_i32_1 = arith.constant 0 : i32
    return %c0_i32, %c0_i32_0 : i32, i32
  }
  func.func @transform_21(%arg0: i32) -> (i32, i32, i32) {
    %c0_i32 = arith.constant 0 : i32
    %c0_i32_0 = arith.constant 0 : i32
    %c0_i32_1 = arith.constant 0 : i32
    return %arg0, %c0_i32, %c0_i32_0 : i32, i32, i32
  }
}

</mosaic_0001>

<llo_original>
// kernel: tpu_custom_call.1
$region0: #{tpu_custom_call.1}
  #allocation0 [shape = 'u32[]', space=smem, size = 0x4, offset = 0x4, fixed_abs, tag = 'smem constant byte address 0x4 - core index']
  #allocation1 [shape = 'u32[72,128]{1,0:T(1,128)}', space=vmem, size = 0x9000, scoped, tag = 'internal scratch']
  #allocation2 [shape = 'f32[18,32]{1,0:T(8,128)}', space=vmem, size = 0x3000, scoped, tag = 'scratch operand']
  #allocation3 [shape = 'f32[1,1]{1,0:T(1,128)S(1)}', space=vmem, size = 0x200, scoped, tag = 'scoped memory for tpu_custom_call.1']
  %s0 = inlined_call_operand.vmem [shape: f32[2,16,32], index: 0, kind: input, shape index: {}]
  %s1 = inlined_call_operand.vmem [shape: bf16[64,32], index: 1, kind: input, shape index: {}]
  %s2 = inlined_call_operand.vmem [shape: f32[1,32], index: 2, kind: input, shape index: {}]
  %s3 = inlined_call_operand.vmem [shape: bf16[288,32], index: 3, kind: input, shape index: {}]
  %s4 = inlined_call_operand.vmem [shape: f32[1,32], index: 4, kind: input, shape index: {}]
  %s5 = inlined_call_operand.vmem [shape: bf16[2,32,32], index: 5, kind: input, shape index: {}]
  %s6 = inlined_call_operand.vmem [shape: f32[1,32], index: 6, kind: input, shape index: {}]
  %s7 = inlined_call_operand.vmem [shape: f32[1,32], index: 7, kind: input, shape index: {}]
  %s8 = inlined_call_operand.vmem [shape: f32[1,32], index: 8, kind: input, shape index: {}]
  %s9 = inlined_call_operand.vmem [shape: bf16[32,32], index: 9, kind: input, shape index: {}]
  %s10 = inlined_call_operand.vmem [shape: f32[1,32], index: 10, kind: input, shape index: {}]
  %s11 = inlined_call_operand.vmem [shape: f32[1,32], index: 11, kind: input, shape index: {}]
  %s12 = inlined_call_operand.vmem [shape: f32[1,32], index: 12, kind: input, shape index: {}]
  %s13 = inlined_call_operand.vmem [shape: bf16[32,128], index: 13, kind: input, shape index: {}]
  %s14 = inlined_call_operand.vmem [shape: f32[1,128], index: 14, kind: input, shape index: {}]
  %s15 = inlined_call_operand.vmem [shape: bf16[128,32], index: 15, kind: input, shape index: {}]
  %s16 = inlined_call_operand.vmem [shape: f32[1,32], index: 16, kind: input, shape index: {}]
  %s17 = inlined_call_operand.vmem [shape: f32[1,32], index: 17, kind: input, shape index: {}]
  %s18 = inlined_call_operand.vmem [shape: f32[1,32], index: 18, kind: input, shape index: {}]
  %s19 = inlined_call_operand.vmem [shape: f32[1,32], index: 19, kind: input, shape index: {}]
  %s20 = inlined_call_operand.<no memory space> [shape: f32[1,1], index: 20, kind: input, shape index: {}]
  %s21 = inlined_call_operand.hbm [shape: f32[2,1,16], index: 21, kind: output, shape index: {}]
  %s22 = sld [smem:[#allocation0]]
  $region117: #{tpu_custom_call.1} parent=0
    _
  %s24 = ssub.s32 1, %s22
  %s25 = scalar_select 0, %s24, %s22
  %v26 = vstv %s20
  %27 = vst [vmem:[#allocation3] sm:$0x1] %v26
  $region1: #{tpu_custom_call.1} parent=0
    #allocation4 [shape = 'u8[1024]{0}', space=vmem, size = 0x400, scoped, tag = 'output window, operand 0']
    #allocation5 [shape = 's32[2]{0}', space=sflag, size = 0x8, scoped, tag = 'scoped memory for tpu_custom_call.1']
    %28 = vsyncpa [#allocation5], 0
    %s29 = scalar_lea.sflag [#allocation5], 1
    %30 = vsyncpa %s29, 0
    loop: start=0, step=1, limit=4
    $region2: #{tpu_custom_call.1} parent=1 // loop_pre_header
      _
    $region3: #{tpu_custom_call.1} parent=1 // loop_header
      %s32 = sphi 0, %s36
      %p33 = scmp.ge.s32.totalorder %s32, 4
      %s42 = sphi 0, %s44
      %s45 = sphi 0, %s42
      %s46 = sphi 0, %s45
      %s62 = sphi 0, %s46
      %s66 = sphi 0, %s66
      %s68 = sphi 0, %s66
      %s69 = sphi 0, %s68
      %s83 = sphi 0, %s69
      %s87 = sphi 0, %s87
      %s89 = sphi 0, %s87
      %s90 = sphi 0, %s89
      %s104 = sphi 0, %s90
      %s108 = sphi 0, %s108
      %s110 = sphi 0, %s108
      %s111 = sphi 0, %s110
      %s125 = sphi 0, %s111
      %s129 = sphi 0, %s129
      %s131 = sphi 0, %s129
      %s132 = sphi 0, %s131
      %s146 = sphi 0, %s132
      %s150 = sphi 0, %s150
      %s152 = sphi 0, %s150
      %s153 = sphi 0, %s152
      %s167 = sphi 0, %s153
      %s171 = sphi 0, %s171
      %s173 = sphi 0, %s171
      %s174 = sphi 0, %s173
      %s188 = sphi 0, %s174
      %s192 = sphi 0, %s192
      %s194 = sphi 0, %s192
      %s195 = sphi 0, %s194
      %s209 = sphi 0, %s195
      %s213 = sphi 0, %s213
      %s215 = sphi 0, %s213
      %s216 = sphi 0, %s215
      %s230 = sphi 0, %s216
      %s234 = sphi 0, %s234
      %s236 = sphi 0, %s234
      %s237 = sphi 0, %s236
      %s251 = sphi 0, %s237
      %s255 = sphi 0, %s255
      %s257 = sphi 0, %s255
      %s258 = sphi 0, %s257
      %s272 = sphi 0, %s258
      %s276 = sphi 0, %s276
      %s278 = sphi 0, %s276
      %s279 = sphi 0, %s278
      %s293 = sphi 0, %s279
      %s297 = sphi 0, %s297
      %s299 = sphi 0, %s297
      %s300 = sphi 0, %s299
      %s314 = sphi 0, %s300
      %s318 = sphi 0, %s318
      %s320 = sphi 0, %s318
      %s321 = sphi 0, %s320
      %s335 = sphi 0, %s321
      %s339 = sphi 0, %s339
      %s341 = sphi 0, %s339
      %s342 = sphi 0, %s341
      %s356 = sphi 0, %s342
      %s360 = sphi 0, %s360
      %s362 = sphi 0, %s360
      %s363 = sphi 0, %s362
      %s377 = sphi 0, %s363
      %s381 = sphi 0, %s381
      %s383 = sphi 0, %s381
      %s384 = sphi 0, %s383
      %s398 = sphi 0, %s384
      %s402 = sphi 0, %s402
      %s404 = sphi 0, %s402
      %s405 = sphi 0, %s404
      %s419 = sphi 0, %s405
      %s423 = sphi 0, %s423
      %s425 = sphi 0, %s423
      %s426 = sphi 0, %s425
      %s440 = sphi 0, %s426
      %s444 = sphi 0, %s444
      %s446 = sphi 0, %s444
      %s447 = sphi 0, %s446
      %s461 = sphi 0, %s447
      %s465 = sphi 0, %s465
      %s467 = sphi 0, %s465
      %s468 = sphi 0, %s467
      %s482 = sphi 0, %s468
      %s488 = sphi 0, %s490
      %s491 = sphi 0, %s488
      %s492 = sphi 0, %s491
      %s508 = sphi 0, %s492
    $region4: #{tpu_custom_call.1} parent=1 // loop_header_branch
      %35 = sbr.rel (%p33) target = $region8
    $region5: #{tpu_custom_call.1} parent=1 // loop_body
      %s37 = ssub.s32 %s32, 1
      %s38 = ssub.s32 %s32, 2
      %s39 = sadd.s32 %s32, 1
      %s40 = ssub.s32 %s32, %s39
      %p41 = scmp.eq.s32.totalorder %s40, 0
      %s43 = sadd.s32 %s42, 1
      %s44 = scalar_select %p41, %s42, %s43
      %p47 = pneg %p41
      %p48 = scmp.eq.s32.totalorder %s32, 1
      %p49 = por %p47, %p48
      %p50 = scmp.ne.s32.totalorder %s42, %s45
      %p51 = scmp.eq.s32.totalorder %s32, 0
      %p52 = por %p50, %p51
      %p53 = scmp.ne.s32.totalorder %s42, %s45
      %p54 = scmp.eq.s32.totalorder %s37, 1
      %p55 = por %p53, %p54
      %p56 = scmp.ne.s32.totalorder %s45, %s46
      %p57 = scmp.eq.s32.totalorder %s37, 0
      %p58 = por %p56, %p57
      %p59 = scmp.ne.s32.totalorder %s45, %s46
      %p60 = scmp.eq.s32.totalorder %s38, 1
      %p61 = por %p59, %p60
      %p63 = scmp.ne.s32.totalorder %s46, %s62
      %p64 = scmp.eq.s32.totalorder %s38, 0
      %p65 = por %p63, %p64
      %s67 = sadd.s32 %s66, 1
      %p70 = scmp.eq.s32.totalorder %s32, 1
      %p71 = scmp.ne.s32.totalorder %s66, %s68
      %p72 = scmp.eq.s32.totalorder %s32, 0
      %p73 = por %p71, %p72
      %p74 = scmp.ne.s32.totalorder %s66, %s68
      %p75 = scmp.eq.s32.totalorder %s37, 1
      %p76 = por %p74, %p75
      %p77 = scmp.ne.s32.totalorder %s68, %s69
      %p78 = scmp.eq.s32.totalorder %s37, 0
      %p79 = por %p77, %p78
      %p80 = scmp.ne.s32.totalorder %s68, %s69
      %p81 = scmp.eq.s32.totalorder %s38, 1
      %p82 = por %p80, %p81
      %p84 = scmp.ne.s32.totalorder %s69, %s83
      %p85 = scmp.eq.s32.totalorder %s38, 0
      %p86 = por %p84, %p85
      %s88 = sadd.s32 %s87, 1
      %p91 = scmp.eq.s32.totalorder %s32, 1
      %p92 = scmp.ne.s32.totalorder %s87, %s89
      %p93 = scmp.eq.s32.totalorder %s32, 0
      %p94 = por %p92, %p93
      %p95 = scmp.ne.s32.totalorder %s87, %s89
      %p96 = scmp.eq.s32.totalorder %s37, 1
      %p97 = por %p95, %p96
      %p98 = scmp.ne.s32.totalorder %s89, %s90
      %p99 = scmp.eq.s32.totalorder %s37, 0
      %p100 = por %p98, %p99
      %p101 = scmp.ne.s32.totalorder %s89, %s90
      %p102 = scmp.eq.s32.totalorder %s38, 1
      %p103 = por %p101, %p102
      %p105 = scmp.ne.s32.totalorder %s90, %s104
      %p106 = scmp.eq.s32.totalorder %s38, 0
      %p107 = por %p105, %p106
      %s109 = sadd.s32 %s108, 1
      %p112 = scmp.eq.s32.totalorder %s32, 1
      %p113 = scmp.ne.s32.totalorder %s108, %s110
      %p114 = scmp.eq.s32.totalorder %s32, 0
      %p115 = por %p113, %p114
      %p116 = scmp.ne.s32.totalorder %s108, %s110
      %p117 = scmp.eq.s32.totalorder %s37, 1
      %p118 = por %p116, %p117
      %p119 = scmp.ne.s32.totalorder %s110, %s111
      %p120 = scmp.eq.s32.totalorder %s37, 0
      %p121 = por %p119, %p120
      %p122 = scmp.ne.s32.totalorder %s110, %s111
      %p123 = scmp.eq.s32.totalorder %s38, 1
      %p124 = por %p122, %p123
      %p126 = scmp.ne.s32.totalorder %s111, %s125
      %p127 = scmp.eq.s32.totalorder %s38, 0
      %p128 = por %p126, %p127
      %s130 = sadd.s32 %s129, 1
      %p133 = scmp.eq.s32.totalorder %s32, 1
      %p134 = scmp.ne.s32.totalorder %s129, %s131
      %p135 = scmp.eq.s32.totalorder %s32, 0
      %p136 = por %p134, %p135
      %p137 = scmp.ne.s32.totalorder %s129, %s131
      %p138 = scmp.eq.s32.totalorder %s37, 1
      %p139 = por %p137, %p138
      %p140 = scmp.ne.s32.totalorder %s131, %s132
      %p141 = scmp.eq.s32.totalorder %s37, 0
      %p142 = por %p140, %p141
      %p143 = scmp.ne.s32.totalorder %s131, %s132
      %p144 = scmp.eq.s32.totalorder %s38, 1
      %p145 = por %p143, %p144
      %p147 = scmp.ne.s32.totalorder %s132, %s146
      %p148 = scmp.eq.s32.totalorder %s38, 0
      %p149 = por %p147, %p148
      %s151 = sadd.s32 %s150, 1
      %p154 = scmp.eq.s32.totalorder %s32, 1
      %p155 = scmp.ne.s32.totalorder %s150, %s152
      %p156 = scmp.eq.s32.totalorder %s32, 0
      %p157 = por %p155, %p156
      %p158 = scmp.ne.s32.totalorder %s150, %s152
      %p159 = scmp.eq.s32.totalorder %s37, 1
      %p160 = por %p158, %p159
      %p161 = scmp.ne.s32.totalorder %s152, %s153
      %p162 = scmp.eq.s32.totalorder %s37, 0
      %p163 = por %p161, %p162
      %p164 = scmp.ne.s32.totalorder %s152, %s153
      %p165 = scmp.eq.s32.totalorder %s38, 1
      %p166 = por %p164, %p165
      %p168 = scmp.ne.s32.totalorder %s153, %s167
      %p169 = scmp.eq.s32.totalorder %s38, 0
      %p170 = por %p168, %p169
      %s172 = sadd.s32 %s171, 1
      %p175 = scmp.eq.s32.totalorder %s32, 1
      %p176 = scmp.ne.s32.totalorder %s171, %s173
      %p177 = scmp.eq.s32.totalorder %s32, 0
      %p178 = por %p176, %p177
      %p179 = scmp.ne.s32.totalorder %s171, %s173
      %p180 = scmp.eq.s32.totalorder %s37, 1
      %p181 = por %p179, %p180
      %p182 = scmp.ne.s32.totalorder %s173, %s174
      %p183 = scmp.eq.s32.totalorder %s37, 0
      %p184 = por %p182, %p183
      %p185 = scmp.ne.s32.totalorder %s173, %s174
      %p186 = scmp.eq.s32.totalorder %s38, 1
      %p187 = por %p185, %p186
      %p189 = scmp.ne.s32.totalorder %s174, %s188
      %p190 = scmp.eq.s32.totalorder %s38, 0
      %p191 = por %p189, %p190
      %s193 = sadd.s32 %s192, 1
      %p196 = scmp.eq.s32.totalorder %s32, 1
      %p197 = scmp.ne.s32.totalorder %s192, %s194
      %p198 = scmp.eq.s32.totalorder %s32, 0
      %p199 = por %p197, %p198
      %p200 = scmp.ne.s32.totalorder %s192, %s194
      %p201 = scmp.eq.s32.totalorder %s37, 1
      %p202 = por %p200, %p201
      %p203 = scmp.ne.s32.totalorder %s194, %s195
      %p204 = scmp.eq.s32.totalorder %s37, 0
      %p205 = por %p203, %p204
      %p206 = scmp.ne.s32.totalorder %s194, %s195
      %p207 = scmp.eq.s32.totalorder %s38, 1
      %p208 = por %p206, %p207
      %p210 = scmp.ne.s32.totalorder %s195, %s209
      %p211 = scmp.eq.s32.totalorder %s38, 0
      %p212 = por %p210, %p211
      %s214 = sadd.s32 %s213, 1
      %p217 = scmp.eq.s32.totalorder %s32, 1
      %p218 = scmp.ne.s32.totalorder %s213, %s215
      %p219 = scmp.eq.s32.totalorder %s32, 0
      %p220 = por %p218, %p219
      %p221 = scmp.ne.s32.totalorder %s213, %s215
      %p222 = scmp.eq.s32.totalorder %s37, 1
      %p223 = por %p221, %p222
      %p224 = scmp.ne.s32.totalorder %s215, %s216
      %p225 = scmp.eq.s32.totalorder %s37, 0
      %p226 = por %p224, %p225
      %p227 = scmp.ne.s32.totalorder %s215, %s216
      %p228 = scmp.eq.s32.totalorder %s38, 1
      %p229 = por %p227, %p228
      %p231 = scmp.ne.s32.totalorder %s216, %s230
      %p232 = scmp.eq.s32.totalorder %s38, 0
      %p233 = por %p231, %p232
      %s235 = sadd.s32 %s234, 1
      %p238 = scmp.eq.s32.totalorder %s32, 1
      %p239 = scmp.ne.s32.totalorder %s234, %s236
      %p240 = scmp.eq.s32.totalorder %s32, 0
      %p241 = por %p239, %p240
      %p242 = scmp.ne.s32.totalorder %s234, %s236
      %p243 = scmp.eq.s32.totalorder %s37, 1
      %p244 = por %p242, %p243
      %p245 = scmp.ne.s32.totalorder %s236, %s237
      %p246 = scmp.eq.s32.totalorder %s37, 0
      %p247 = por %p245, %p246
      %p248 = scmp.ne.s32.totalorder %s236, %s237
      %p249 = scmp.eq.s32.totalorder %s38, 1
      %p250 = por %p248, %p249
      %p252 = scmp.ne.s32.totalorder %s237, %s251
      %p253 = scmp.eq.s32.totalorder %s38, 0
      %p254 = por %p252, %p253
      %s256 = sadd.s32 %s255, 1
      %p259 = scmp.eq.s32.totalorder %s32, 1
      %p260 = scmp.ne.s32.totalorder %s255, %s257
      %p261 = scmp.eq.s32.totalorder %s32, 0
      %p262 = por %p260, %p261
      %p263 = scmp.ne.s32.totalorder %s255, %s257
      %p264 = scmp.eq.s32.totalorder %s37, 1
      %p265 = por %p263, %p264
      %p266 = scmp.ne.s32.totalorder %s257, %s258
      %p267 = scmp.eq.s32.totalorder %s37, 0
      %p268 = por %p266, %p267
      %p269 = scmp.ne.s32.totalorder %s257, %s258
      %p270 = scmp.eq.s32.totalorder %s38, 1
      %p271 = por %p269, %p270
      %p273 = scmp.ne.s32.totalorder %s258, %s272
      %p274 = scmp.eq.s32.totalorder %s38, 0
      %p275 = por %p273, %p274
      %s277 = sadd.s32 %s276, 1
      %p280 = scmp.eq.s32.totalorder %s32, 1
      %p281 = scmp.ne.s32.totalorder %s276, %s278
      %p282 = scmp.eq.s32.totalorder %s32, 0
      %p283 = por %p281, %p282
      %p284 = scmp.ne.s32.totalorder %s276, %s278
      %p285 = scmp.eq.s32.totalorder %s37, 1
      %p286 = por %p284, %p285
      %p287 = scmp.ne.s32.totalorder %s278, %s279
      %p288 = scmp.eq.s32.totalorder %s37, 0
      %p289 = por %p287, %p288
      %p290 = scmp.ne.s32.totalorder %s278, %s279
      %p291 = scmp.eq.s32.totalorder %s38, 1
      %p292 = por %p290, %p291
      %p294 = scmp.ne.s32.totalorder %s279, %s293
      %p295 = scmp.eq.s32.totalorder %s38, 0
      %p296 = por %p294, %p295
      %s298 = sadd.s32 %s297, 1
      %p301 = scmp.eq.s32.totalorder %s32, 1
      %p302 = scmp.ne.s32.totalorder %s297, %s299
      %p303 = scmp.eq.s32.totalorder %s32, 0
      %p304 = por %p302, %p303
      %p305 = scmp.ne.s32.totalorder %s297, %s299
      %p306 = scmp.eq.s32.totalorder %s37, 1
      %p307 = por %p305, %p306
      %p308 = scmp.ne.s32.totalorder %s299, %s300
      %p309 = scmp.eq.s32.totalorder %s37, 0
      %p310 = por %p308, %p309
      %p311 = scmp.ne.s32.totalorder %s299, %s300
      %p312 = scmp.eq.s32.totalorder %s38, 1
      %p313 = por %p311, %p312
      %p315 = scmp.ne.s32.totalorder %s300, %s314
      %p316 = scmp.eq.s32.totalorder %s38, 0
      %p317 = por %p315, %p316
      %s319 = sadd.s32 %s318, 1
      %p322 = scmp.eq.s32.totalorder %s32, 1
      %p323 = scmp.ne.s32.totalorder %s318, %s320
      %p324 = scmp.eq.s32.totalorder %s32, 0
      %p325 = por %p323, %p324
      %p326 = scmp.ne.s32.totalorder %s318, %s320
      %p327 = scmp.eq.s32.totalorder %s37, 1
      %p328 = por %p326, %p327
      %p329 = scmp.ne.s32.totalorder %s320, %s321
      %p330 = scmp.eq.s32.totalorder %s37, 0
      %p331 = por %p329, %p330
      %p332 = scmp.ne.s32.totalorder %s320, %s321
      %p333 = scmp.eq.s32.totalorder %s38, 1
      %p334 = por %p332, %p333
      %p336 = scmp.ne.s32.totalorder %s321, %s335
      %p337 = scmp.eq.s32.totalorder %s38, 0
      %p338 = por %p336, %p337
      %s340 = sadd.s32 %s339, 1
      %p343 = scmp.eq.s32.totalorder %s32, 1
      %p344 = scmp.ne.s32.totalorder %s339, %s341
      %p345 = scmp.eq.s32.totalorder %s32, 0
      %p346 = por %p344, %p345
      %p347 = scmp.ne.s32.totalorder %s339, %s341
      %p348 = scmp.eq.s32.totalorder %s37, 1
      %p349 = por %p347, %p348
      %p350 = scmp.ne.s32.totalorder %s341, %s342
      %p351 = scmp.eq.s32.totalorder %s37, 0
      %p352 = por %p350, %p351
      %p353 = scmp.ne.s32.totalorder %s341, %s342
      %p354 = scmp.eq.s32.totalorder %s38, 1
      %p355 = por %p353, %p354
      %p357 = scmp.ne.s32.totalorder %s342, %s356
      %p358 = scmp.eq.s32.totalorder %s38, 0
      %p359 = por %p357, %p358
      %s361 = sadd.s32 %s360, 1
      %p364 = scmp.eq.s32.totalorder %s32, 1
      %p365 = scmp.ne.s32.totalorder %s360, %s362
      %p366 = scmp.eq.s32.totalorder %s32, 0
      %p367 = por %p365, %p366
      %p368 = scmp.ne.s32.totalorder %s360, %s362
      %p369 = scmp.eq.s32.totalorder %s37, 1
      %p370 = por %p368, %p369
      %p371 = scmp.ne.s32.totalorder %s362, %s363
      %p372 = scmp.eq.s32.totalorder %s37, 0
      %p373 = por %p371, %p372
      %p374 = scmp.ne.s32.totalorder %s362, %s363
      %p375 = scmp.eq.s32.totalorder %s38, 1
      %p376 = por %p374, %p375
      %p378 = scmp.ne.s32.totalorder %s363, %s377
      %p379 = scmp.eq.s32.totalorder %s38, 0
      %p380 = por %p378, %p379
      %s382 = sadd.s32 %s381, 1
      %p385 = scmp.eq.s32.totalorder %s32, 1
      %p386 = scmp.ne.s32.totalorder %s381, %s383
      %p387 = scmp.eq.s32.totalorder %s32, 0
      %p388 = por %p386, %p387
      %p389 = scmp.ne.s32.totalorder %s381, %s383
      %p390 = scmp.eq.s32.totalorder %s37, 1
      %p391 = por %p389, %p390
      %p392 = scmp.ne.s32.totalorder %s383, %s384
      %p393 = scmp.eq.s32.totalorder %s37, 0
      %p394 = por %p392, %p393
      %p395 = scmp.ne.s32.totalorder %s383, %s384
      %p396 = scmp.eq.s32.totalorder %s38, 1
      %p397 = por %p395, %p396
      %p399 = scmp.ne.s32.totalorder %s384, %s398
      %p400 = scmp.eq.s32.totalorder %s38, 0
      %p401 = por %p399, %p400
      %s403 = sadd.s32 %s402, 1
      %p406 = scmp.eq.s32.totalorder %s32, 1
      %p407 = scmp.ne.s32.totalorder %s402, %s404
      %p408 = scmp.eq.s32.totalorder %s32, 0
      %p409 = por %p407, %p408
      %p410 = scmp.ne.s32.totalorder %s402, %s404
      %p411 = scmp.eq.s32.totalorder %s37, 1
      %p412 = por %p410, %p411
      %p413 = scmp.ne.s32.totalorder %s404, %s405
      %p414 = scmp.eq.s32.totalorder %s37, 0
      %p415 = por %p413, %p414
      %p416 = scmp.ne.s32.totalorder %s404, %s405
      %p417 = scmp.eq.s32.totalorder %s38, 1
      %p418 = por %p416, %p417
      %p420 = scmp.ne.s32.totalorder %s405, %s419
      %p421 = scmp.eq.s32.totalorder %s38, 0
      %p422 = por %p420, %p421
      %s424 = sadd.s32 %s423, 1
      %p427 = scmp.eq.s32.totalorder %s32, 1
      %p428 = scmp.ne.s32.totalorder %s423, %s425
      %p429 = scmp.eq.s32.totalorder %s32, 0
      %p430 = por %p428, %p429
      %p431 = scmp.ne.s32.totalorder %s423, %s425
      %p432 = scmp.eq.s32.totalorder %s37, 1
      %p433 = por %p431, %p432
      %p434 = scmp.ne.s32.totalorder %s425, %s426
      %p435 = scmp.eq.s32.totalorder %s37, 0
      %p436 = por %p434, %p435
      %p437 = scmp.ne.s32.totalorder %s425, %s426
      %p438 = scmp.eq.s32.totalorder %s38, 1
      %p439 = por %p437, %p438
      %p441 = scmp.ne.s32.totalorder %s426, %s440
      %p442 = scmp.eq.s32.totalorder %s38, 0
      %p443 = por %p441, %p442
      %s445 = sadd.s32 %s444, 1
      %p448 = scmp.eq.s32.totalorder %s32, 1
      %p449 = scmp.ne.s32.totalorder %s444, %s446
      %p450 = scmp.eq.s32.totalorder %s32, 0
      %p451 = por %p449, %p450
      %p452 = scmp.ne.s32.totalorder %s444, %s446
      %p453 = scmp.eq.s32.totalorder %s37, 1
      %p454 = por %p452, %p453
      %p455 = scmp.ne.s32.totalorder %s446, %s447
      %p456 = scmp.eq.s32.totalorder %s37, 0
      %p457 = por %p455, %p456
      %p458 = scmp.ne.s32.totalorder %s446, %s447
      %p459 = scmp.eq.s32.totalorder %s38, 1
      %p460 = por %p458, %p459
      %p462 = scmp.ne.s32.totalorder %s447, %s461
      %p463 = scmp.eq.s32.totalorder %s38, 0
      %p464 = por %p462, %p463
      %s466 = sadd.s32 %s465, 1
      %p469 = scmp.eq.s32.totalorder %s32, 1
      %p470 = scmp.ne.s32.totalorder %s465, %s467
      %p471 = scmp.eq.s32.totalorder %s32, 0
      %p472 = por %p470, %p471
      %p473 = scmp.ne.s32.totalorder %s465, %s467
      %p474 = scmp.eq.s32.totalorder %s37, 1
      %p475 = por %p473, %p474
      %p476 = scmp.ne.s32.totalorder %s467, %s468
      %p477 = scmp.eq.s32.totalorder %s37, 0
      %p478 = por %p476, %p477
      %p479 = scmp.ne.s32.totalorder %s467, %s468
      %p480 = scmp.eq.s32.totalorder %s38, 1
      %p481 = por %p479, %p480
      %p483 = scmp.ne.s32.totalorder %s468, %s482
      %p484 = scmp.eq.s32.totalorder %s38, 0
      %p485 = por %p483, %p484
      %s486 = ssub.s32 %s32, %s39
      %p487 = scmp.eq.s32.totalorder %s486, 0
      %s489 = sadd.s32 %s488, 1
      %s490 = scalar_select %p487, %s488, %s489
      %p493 = pneg %p487
      %p494 = scmp.eq.s32.totalorder %s32, 1
      %p495 = por %p493, %p494
      %p496 = scmp.ne.s32.totalorder %s488, %s491
      %p497 = scmp.eq.s32.totalorder %s32, 0
      %p498 = por %p496, %p497
      %p499 = scmp.ne.s32.totalorder %s488, %s491
      %p500 = scmp.eq.s32.totalorder %s37, 1
      %p501 = por %p499, %p500
      %p502 = scmp.ne.s32.totalorder %s491, %s492
      %p503 = scmp.eq.s32.totalorder %s37, 0
      %p504 = por %p502, %p503
      %p505 = scmp.ne.s32.totalorder %s491, %s492
      %p506 = scmp.eq.s32.totalorder %s38, 1
      %p507 = por %p505, %p506
      %p509 = scmp.ne.s32.totalorder %s492, %s508
      %p510 = scmp.eq.s32.totalorder %s38, 0
      %p511 = por %p509, %p510
      %p512 = scmp.le.s32.totalorder 1, %s32
      %p513 = scmp.lt.s32.totalorder %s32, 3
      %p514 = pnand %p512, %p513
      %p515 = pneg %p514
      // Predicated region
      $region9: #{tpu_custom_call.1} parent=5 // pred_check
        _
      $region10: #{tpu_custom_call.1} parent=5 // pred_check_branch
        %517 = sbr.rel (%p514) target = $region12
      $region11: #{tpu_custom_call.1} parent=5 // pred_region
        %s518 = ssub.s32 %s32, 1
        // Predicated region
        $region13: #{tpu_custom_call.1} parent=11 // pred_check
          %p519 = pneg %p79
        $region14: #{tpu_custom_call.1} parent=11 // pred_check_branch
          %521 = sbr.rel (%p519) target = $region16
        $region15: #{tpu_custom_call.1} parent=11 // pred_region
          _
        $region16: #{tpu_custom_call.1} parent=11 // pred_fallthru
          _
        // Predicated region
        $region17: #{tpu_custom_call.1} parent=11 // pred_check
          %p522 = pneg %p100
        $region18: #{tpu_custom_call.1} parent=11 // pred_check_branch
          %524 = sbr.rel (%p522) target = $region20
        $region19: #{tpu_custom_call.1} parent=11 // pred_region
          _
        $region20: #{tpu_custom_call.1} parent=11 // pred_fallthru
          _
        // Predicated region
        $region21: #{tpu_custom_call.1} parent=11 // pred_check
          %p525 = pneg %p121
        $region22: #{tpu_custom_call.1} parent=11 // pred_check_branch
          %527 = sbr.rel (%p525) target = $region24
        $region23: #{tpu_custom_call.1} parent=11 // pred_region
          _
        $region24: #{tpu_custom_call.1} parent=11 // pred_fallthru
          _
        // Predicated region
        $region25: #{tpu_custom_call.1} parent=11 // pred_check
          %p528 = pneg %p142
        $region26: #{tpu_custom_call.1} parent=11 // pred_check_branch
          %530 = sbr.rel (%p528) target = $region28
        $region27: #{tpu_custom_call.1} parent=11 // pred_region
          _
        $region28: #{tpu_custom_call.1} parent=11 // pred_fallthru
          _
        // Predicated region
        $region29: #{tpu_custom_call.1} parent=11 // pred_check
          %p531 = pneg %p163
        $region30: #{tpu_custom_call.1} parent=11 // pred_check_branch
          %533 = sbr.rel (%p531) target = $region32
        $region31: #{tpu_custom_call.1} parent=11 // pred_region
          _
        $region32: #{tpu_custom_call.1} parent=11 // pred_fallthru
          _
        // Predicated region
        $region33: #{tpu_custom_call.1} parent=11 // pred_check
          %p534 = pneg %p184
        $region34: #{tpu_custom_call.1} parent=11 // pred_check_branch
          %536 = sbr.rel (%p534) target = $region36
        $region35: #{tpu_custom_call.1} parent=11 // pred_region
          _
        $region36: #{tpu_custom_call.1} parent=11 // pred_fallthru
          _
        // Predicated region
        $region37: #{tpu_custom_call.1} parent=11 // pred_check
          %p537 = pneg %p205
        $region38: #{tpu_custom_call.1} parent=11 // pred_check_branch
          %539 = sbr.rel (%p537) target = $region40
        $region39: #{tpu_custom_call.1} parent=11 // pred_region
          _
        $region40: #{tpu_custom_call.1} parent=11 // pred_fallthru
          _
        // Predicated region
        $region41: #{tpu_custom_call.1} parent=11 // pred_check
          %p540 = pneg %p226
        $region42: #{tpu_custom_call.1} parent=11 // pred_check_branch
          %542 = sbr.rel (%p540) target = $region44
        $region43: #{tpu_custom_call.1} parent=11 // pred_region
          _
        $region44: #{tpu_custom_call.1} parent=11 // pred_fallthru
          _
        // Predicated region
        $region45: #{tpu_custom_call.1} parent=11 // pred_check
          %p543 = pneg %p247
        $region46: #{tpu_custom_call.1} parent=11 // pred_check_branch
          %545 = sbr.rel (%p543) target = $region48
        $region47: #{tpu_custom_call.1} parent=11 // pred_region
          _
        $region48: #{tpu_custom_call.1} parent=11 // pred_fallthru
          _
        // Predicated region
        $region49: #{tpu_custom_call.1} parent=11 // pred_check
          %p546 = pneg %p268
        $region50: #{tpu_custom_call.1} parent=11 // pred_check_branch
          %548 = sbr.rel (%p546) target = $region52
        $region51: #{tpu_custom_call.1} parent=11 // pred_region
          _
        $region52: #{tpu_custom_call.1} parent=11 // pred_fallthru
          _
        // Predicated region
        $region53: #{tpu_custom_call.1} parent=11 // pred_check
          %p549 = pneg %p289
        $region54: #{tpu_custom_call.1} parent=11 // pred_check_branch
          %551 = sbr.rel (%p549) target = $region56
        $region55: #{tpu_custom_call.1} parent=11 // pred_region
          _
        $region56: #{tpu_custom_call.1} parent=11 // pred_fallthru
          _
        // Predicated region
        $region57: #{tpu_custom_call.1} parent=11 // pred_check
          %p552 = pneg %p310
        $region58: #{tpu_custom_call.1} parent=11 // pred_check_branch
          %554 = sbr.rel (%p552) target = $region60
        $region59: #{tpu_custom_call.1} parent=11 // pred_region
          _
        $region60: #{tpu_custom_call.1} parent=11 // pred_fallthru
          _
        // Predicated region
        $region61: #{tpu_custom_call.1} parent=11 // pred_check
          %p555 = pneg %p331
        $region62: #{tpu_custom_call.1} parent=11 // pred_check_branch
          %557 = sbr.rel (%p555) target = $region64
        $region63: #{tpu_custom_call.1} parent=11 // pred_region
          _
        $region64: #{tpu_custom_call.1} parent=11 // pred_fallthru
          _
        // Predicated region
        $region65: #{tpu_custom_call.1} parent=11 // pred_check
          %p558 = pneg %p352
        $region66: #{tpu_custom_call.1} parent=11 // pred_check_branch
          %560 = sbr.rel (%p558) target = $region68
        $region67: #{tpu_custom_call.1} parent=11 // pred_region
          _
        $region68: #{tpu_custom_call.1} parent=11 // pred_fallthru
          _
        // Predicated region
        $region69: #{tpu_custom_call.1} parent=11 // pred_check
          %p561 = pneg %p373
        $region70: #{tpu_custom_call.1} parent=11 // pred_check_branch
          %563 = sbr.rel (%p561) target = $region72
        $region71: #{tpu_custom_call.1} parent=11 // pred_region
          _
        $region72: #{tpu_custom_call.1} parent=11 // pred_fallthru
          _
        // Predicated region
        $region73: #{tpu_custom_call.1} parent=11 // pred_check
          %p564 = pneg %p394
        $region74: #{tpu_custom_call.1} parent=11 // pred_check_branch
          %566 = sbr.rel (%p564) target = $region76
        $region75: #{tpu_custom_call.1} parent=11 // pred_region
          _
        $region76: #{tpu_custom_call.1} parent=11 // pred_fallthru
          _
        // Predicated region
        $region77: #{tpu_custom_call.1} parent=11 // pred_check
          %p567 = pneg %p415
        $region78: #{tpu_custom_call.1} parent=11 // pred_check_branch
          %569 = sbr.rel (%p567) target = $region80
        $region79: #{tpu_custom_call.1} parent=11 // pred_region
          _
        $region80: #{tpu_custom_call.1} parent=11 // pred_fallthru
          _
        // Predicated region
        $region81: #{tpu_custom_call.1} parent=11 // pred_check
          %p570 = pneg %p436
        $region82: #{tpu_custom_call.1} parent=11 // pred_check_branch
          %572 = sbr.rel (%p570) target = $region84
        $region83: #{tpu_custom_call.1} parent=11 // pred_region
          _
        $region84: #{tpu_custom_call.1} parent=11 // pred_fallthru
          _
        // Predicated region
        $region85: #{tpu_custom_call.1} parent=11 // pred_check
          %p573 = pneg %p457
        $region86: #{tpu_custom_call.1} parent=11 // pred_check_branch
          %575 = sbr.rel (%p573) target = $region88
        $region87: #{tpu_custom_call.1} parent=11 // pred_region
          _
        $region88: #{tpu_custom_call.1} parent=11 // pred_fallthru
          _
        // Predicated region
        $region89: #{tpu_custom_call.1} parent=11 // pred_check
          %p576 = pneg %p478
        $region90: #{tpu_custom_call.1} parent=11 // pred_check_branch
          %578 = sbr.rel (%p576) target = $region92
        $region91: #{tpu_custom_call.1} parent=11 // pred_region
          _
        $region92: #{tpu_custom_call.1} parent=11 // pred_fallthru
          _
      $region12: #{tpu_custom_call.1} parent=5 // pred_fallthru
        _
      %p579 = scmp.lt.s32.totalorder %s32, 2
      // Predicated region
      $region93: #{tpu_custom_call.1} parent=5 // pred_check
        %p580 = pneg %p579
      $region94: #{tpu_custom_call.1} parent=5 // pred_check_branch
        %582 = sbr.rel (%p580) target = $region96
      $region95: #{tpu_custom_call.1} parent=5 // pred_region
        // Predicated region
        $region97: #{tpu_custom_call.1} parent=95 // pred_check
          %p583 = pneg %p52
        $region98: #{tpu_custom_call.1} parent=95 // pred_check_branch
          %585 = sbr.rel (%p583) target = $region100
        $region99: #{tpu_custom_call.1} parent=95 // pred_region
          %p586 = scmp.lt.s32.totalorder %s32, 1
          %s587 = scalar_select %p586, %s32, 1
          %s588 = smul.addr %s587, 2
          %s589 = smul.addr %s588, 8
          %s590 = scalar_lea.vmem %s0, %s589
        $region100: #{tpu_custom_call.1} parent=95 // pred_fallthru
          _
      $region96: #{tpu_custom_call.1} parent=5 // pred_fallthru
        _
      %p591 = scmp.le.s32.totalorder 1, %s32
      %p592 = scmp.lt.s32.totalorder %s32, 3
      %p593 = pnand %p591, %p592
      %p594 = pneg %p593
      // Predicated region
      $region101: #{tpu_custom_call.1} parent=5 // pred_check
        _
      $region102: #{tpu_custom_call.1} parent=5 // pred_check_branch
        %596 = sbr.rel (%p593) target = $region104
      $region103: #{tpu_custom_call.1} parent=5 // pred_region
        %s597 = ssub.s32 %s32, 1
        %p598 = scmp.lt.s32.totalorder %s37, 1
        %s599 = scalar_select %p598, %s37, 1
        %s600 = smul.addr %s599, 2
        %s601 = smul.addr %s600, 8
        %s602 = scalar_lea.vmem %s0, %s601
        %p603 = pneg %p58
        %p604 = pneg %p55
        %p605 = pneg %p79
        %p606 = pneg %p76
        %p607 = pneg %p100
        %p608 = pneg %p97
        %p609 = pneg %p121
        %p610 = pneg %p118
        %p611 = pneg %p142
        %p612 = pneg %p139
        %p613 = pneg %p163
        %p614 = pneg %p160
        %p615 = pneg %p184
        %p616 = pneg %p181
        %p617 = pneg %p205
        %p618 = pneg %p202
        %p619 = pneg %p226
        %p620 = pneg %p223
        %p621 = pneg %p247
        %p622 = pneg %p244
        %p623 = pneg %p268
        %p624 = pneg %p265
        %p625 = pneg %p289
        %p626 = pneg %p286
        %p627 = pneg %p310
        %p628 = pneg %p307
        %p629 = pneg %p331
        %p630 = pneg %p328
        %p631 = pneg %p352
        %p632 = pneg %p349
        %p633 = pneg %p373
        %p634 = pneg %p370
        %p635 = pneg %p394
        %p636 = pneg %p391
        %p637 = pneg %p415
        %p638 = pneg %p412
        %p639 = pneg %p436
        %p640 = pneg %p433
        %p641 = pneg %p457
        %p642 = pneg %p454
        %p643 = pneg %p478
        %p644 = pneg %p475
        %p645 = pneg %p504
        %p646 = pneg %p501
        %s647 = sand.u32 %s491, 1
        %s648 = scalar_lea.sflag [#allocation5], %s647
        %s649 = sand.u32 %s491, 1
        %s650 = scalar_lea.vmem [#allocation4], %s649
        %p651 = scmp.lt.s32.totalorder %s37, 1
        %s652 = scalar_select %p651, %s37, 1
        %s653 = smul.addr %s652, 2
        %s654 = smul.addr %s653, 8
        %s655 = scalar_lea.vmem %s0, %s654
        %v657 = vld [vmem:[%s655] sm:$0xff]
        %v658 = vld [vmem:[%s655 + $0x8] sm:$0xff]
        %vm661 = vcmask 1040384
        %v662 = vrot.slane %v657, 7
        %v663 = vrot.slane %v658, 7
        %v664 = vsel %vm661, %v662, %v663
        %v668 = vrot.slane %v658, 6
        %v670 = vsel %vm661, %v657, %v662
        %v671 = vsel %vm661, %v663, %v668
        %vm674 = vcmask 1046528
        %v675 = vrot.slane %v670, 1
        %v676 = vrot.slane %v664, 1
        %v677 = vsel %vm674, %v675, %v676
        %v678 = vrot.slane %v671, 1
        %v679 = vsel %vm674, %v676, %v678
        %v682 = vadd.f32 %v670, %v677
        %v683 = vadd.f32 %v664, %v679
        %vm684 = vcmask 1045504
        %v685 = vrot.slane %v670, 2
        %v686 = vrot.slane %v664, 2
        %v687 = vsel %vm684, %v685, %v686
        %v688 = vrot.slane %v671, 2
        %v689 = vsel %vm684, %v686, %v688
        %v692 = vadd.f32 %v682, %v687
        %v693 = vadd.f32 %v683, %v689
        %v694 = vmul.f32 %v692, 0.33333334
        %v695 = vmul.f32 %v693, 0.33333334
        %v696 = vsub.f32 %v657, %v694
        %v697 = vsub.f32 %v658, %v695
        %v700 = vrot.slane %v696, 7
        %v701 = vrot.slane %v697, 7
        %v702 = vsel %vm661, %v700, %v701
        %v706 = vsel %vm661, 0.0, %v700
        %v707 = vsel %vm661, %v701, 0.0
        %vm708 = vcmask 261120
        %709 = vst.msk [vmem:[#allocation2] sm:$0xff] %vm708, %v706
        %710 = vst.msk [vmem:[#allocation2 + $0x8] sm:$0xff] %vm708, %v702
        %vm711 = vcmask 254976
        %712 = vst.msk [vmem:[#allocation2 + $0x10] sm:$0x3] %vm711, %v707
        %v713 = vld [vmem:[#allocation2] ss:$2 sm:$0xff]
        %s714 = scalar_lea.vmem [#allocation2], 16
        %v715 = vld [vmem:[%s714] ss:$2 sm:$0x1]
        %s716 = scalar_lea.vmem [#allocation2], 1
        %v717 = vld [vmem:[%s716] ss:$2 sm:$0xff]
        %s718 = scalar_lea.vmem [#allocation2], 17
        %v719 = vld [vmem:[%s718] ss:$2 sm:$0x1]
        %722 = vrot.lane.b32.xlu0 %v717, 32
        %v723 = vpop.permute.xlu0 %722
        %724 = vrot.lane.b32.xlu0 %v719, 32
        %v725 = vpop.permute.xlu0 %724
        %v728 = vsel %vm708, %v713, %v723
        %v729 = vsel %vm708, %v715, %v725
        %v730 = vpack.c.bf16 %v729, %v728
        %v731 = vld [vmem:[%s1] sm:$0xf]
        %v732 = vld [vmem:[%s1 + $0x4] sm:$0xf]
        %v733 = vld [vmem:[%s1 + $0x8] sm:$0xf]
        %v734 = vld [vmem:[%s1 + $0xc] sm:$0xf]
        %v735 = vld [vmem:[%s1 + $0x10] sm:$0xf]
        %v736 = vld [vmem:[%s1 + $0x14] sm:$0xf]
        %v737 = vld [vmem:[%s1 + $0x18] sm:$0xf]
        %v738 = vld [vmem:[%s1 + $0x1c] sm:$0xf]
        %v739 = vld [vmem:[%s2] sm:$0x1]
        %v741 = vperm.slane %v739, 0
        %v751 = vunpack.c.l.b16 %v731
        %v752 = vunpack.c.l.b16 %v732
        %v753 = vunpack.c.l.b16 %v733
        %v754 = vunpack.c.l.b16 %v734
        %v755 = vunpack.c.l.b16 %v735
        %v756 = vunpack.c.l.b16 %v736
        %v757 = vunpack.c.l.b16 %v737
        %v758 = vunpack.c.l.b16 %v738
        %v759 = vpack.c.b16 %v752, %v751
        %v760 = vpack.c.b16 %v754, %v753
        %v761 = vpack.c.b16 %v756, %v755
        %v762 = vpack.c.b16 %v758, %v757
        %vm767 = vcmask 523264
        %v769 = vsel %vm767, %v730, 0
        %771 = vmatpush.bf16.msra.mxu0 0
        %772 = vmatpush.bf16.msra.mxu0 0
        %773 = vmatpush.bf16.msra.mxu0 0
        %774 = vmatpush.bf16.msra.mxu0 0
        %775 = vmatpush.bf16.msra.mxu0 %v762
        %776 = vmatpush.bf16.msra.mxu0 %v761
        %777 = vmatpush.bf16.msra.mxu0 %v760
        %778 = vmatpush.bf16.msra.mxu0 %v759
        %779 = vmatmul.bf16.gmra.mxu0 %v769
        %v780 = vpop.f32.mrf.mxu0
        %v781 = vadd.f32 %v741, %v780
        %v782 = vpop.f32.mrf.mxu0
        %v783 = vadd.f32 %v741, %v782
        %784 = vdwg.mxu0
        %v785 = vtanh.pop %v781
        %v786 = vtanh.pop %v783
        %v789 = vrot.slane 0.0, 1
        %v790 = vrot.slane %v785, 1
        %v791 = vsel %vm674, %v789, %v790
        %792 = vrot.lane.b32.xlu0 %v791, 32
        %v793 = vpop.permute.xlu0 %792
        %794 = vrot.lane.b32.xlu0 %v790, 32
        %v795 = vpop.permute.xlu0 %794
        %v798 = vrot.slane 0.0, 2
        %v799 = vrot.slane %v785, 2
        %v800 = vsel %vm684, %v798, %v799
        %801 = vrot.lane.b32.xlu0 %v800, 64
        %v802 = vpop.permute.xlu0 %801
        %803 = vrot.lane.b32.xlu0 %v799, 64
        %v804 = vpop.permute.xlu0 %803
        %vm807 = vcmask 1044480
        %v808 = vrot.slane 0.0, 3
        %v809 = vrot.slane %v785, 3
        %v810 = vsel %vm807, %v808, %v809
        %811 = vrot.lane.b32.xlu0 %v810, 96
        %v812 = vpop.permute.xlu0 %811
        %813 = vrot.lane.b32.xlu0 %v809, 96
        %v814 = vpop.permute.xlu0 %813
        %vm817 = vcmask 1043456
        %v818 = vrot.slane 0.0, 4
        %v819 = vrot.slane %v785, 4
        %v820 = vsel %vm817, %v818, %v819
        %vm823 = vcmask 1042432
        %v824 = vrot.slane 0.0, 5
        %v825 = vrot.slane %v785, 5
        %v826 = vsel %vm823, %v824, %v825
        %827 = vrot.lane.b32.xlu0 %v826, 32
        %v828 = vpop.permute.xlu0 %827
        %829 = vrot.lane.b32.xlu0 %v825, 32
        %v830 = vpop.permute.xlu0 %829
        %vm833 = vcmask 1041408
        %v834 = vrot.slane 0.0, 6
        %v835 = vrot.slane %v785, 6
        %v836 = vsel %vm833, %v834, %v835
        %837 = vrot.lane.b32.xlu0 %v836, 64
        %v838 = vpop.permute.xlu0 %837
        %839 = vrot.lane.b32.xlu0 %v835, 64
        %v840 = vpop.permute.xlu0 %839
        %v843 = vrot.slane 0.0, 7
        %v844 = vrot.slane %v785, 7
        %v845 = vsel %vm661, %v843, %v844
        %846 = vrot.lane.b32.xlu0 %v845, 96
        %v847 = vpop.permute.xlu0 %846
        %848 = vrot.lane.b32.xlu0 %v844, 96
        %v849 = vpop.permute.xlu0 %848
        %v852 = vsel %vm708, 0.0, %v793
        %v853 = vsel %vm708, %v785, %v795
        %v854 = vsel %vm767, %v852, %v802
        %v855 = vsel %vm767, %v853, %v804
        %vm856 = vcmask 785408
        %v857 = vsel %vm856, %v854, %v812
        %v858 = vsel %vm856, %v855, %v814
        %v859 = vsel %vm708, %v820, %v828
        %v860 = vsel %vm708, %v819, %v830
        %v861 = vsel %vm767, %v859, %v838
        %v862 = vsel %vm767, %v860, %v840
        %v863 = vsel %vm856, %v861, %v847
        %v864 = vsel %vm856, %v862, %v849
        %v865 = vpack.c.bf16 %v858, %v857
        %v866 = vpack.c.bf16 %v864, %v863
        %v867 = vpack.c.bf16 %v786, %v785
        %v868 = vld [vmem:[%s3] sm:$0xf]
        %v869 = vld [vmem:[%s3 + $0x4] sm:$0xf]
        %v870 = vld [vmem:[%s3 + $0x8] sm:$0xf]
        %v871 = vld [vmem:[%s3 + $0xc] sm:$0xf]
        %v872 = vld [vmem:[%s3 + $0x10] sm:$0xf]
        %v873 = vld [vmem:[%s3 + $0x14] sm:$0xf]
        %v874 = vld [vmem:[%s3 + $0x18] sm:$0xf]
        %v875 = vld [vmem:[%s3 + $0x1c] sm:$0xf]
        %v876 = vld [vmem:[%s3 + $0x20] sm:$0xf]
        %v877 = vld [vmem:[%s3 + $0x24] sm:$0xf]
        %v878 = vld [vmem:[%s3 + $0x28] sm:$0xf]
        %v879 = vld [vmem:[%s3 + $0x2c] sm:$0xf]
        %v880 = vld [vmem:[%s3 + $0x30] sm:$0xf]
        %v881 = vld [vmem:[%s3 + $0x34] sm:$0xf]
        %v882 = vld [vmem:[%s3 + $0x38] sm:$0xf]
        %v883 = vld [vmem:[%s3 + $0x3c] sm:$0xf]
        %v884 = vld [vmem:[%s3 + $0x40] sm:$0xf]
        %v885 = vld [vmem:[%s3 + $0x44] sm:$0xf]
        %v886 = vld [vmem:[%s3 + $0x48] sm:$0xf]
        %v887 = vld [vmem:[%s3 + $0x4c] sm:$0xf]
        %v888 = vld [vmem:[%s3 + $0x50] sm:$0xf]
        %v889 = vld [vmem:[%s3 + $0x54] sm:$0xf]
        %v890 = vld [vmem:[%s3 + $0x58] sm:$0xf]
        %v891 = vld [vmem:[%s3 + $0x5c] sm:$0xf]
        %v892 = vld [vmem:[%s3 + $0x60] sm:$0xf]
        %v893 = vld [vmem:[%s3 + $0x64] sm:$0xf]
        %v894 = vld [vmem:[%s3 + $0x68] sm:$0xf]
        %v895 = vld [vmem:[%s3 + $0x6c] sm:$0xf]
        %v896 = vld [vmem:[%s3 + $0x70] sm:$0xf]
        %v897 = vld [vmem:[%s3 + $0x74] sm:$0xf]
        %v898 = vld [vmem:[%s3 + $0x78] sm:$0xf]
        %v899 = vld [vmem:[%s3 + $0x7c] sm:$0xf]
        %v900 = vld [vmem:[%s3 + $0x80] sm:$0xf]
        %v901 = vld [vmem:[%s3 + $0x84] sm:$0xf]
        %v902 = vld [vmem:[%s3 + $0x88] sm:$0xf]
        %v903 = vld [vmem:[%s3 + $0x8c] sm:$0xf]
        %v904 = vld [vmem:[%s4] sm:$0x1]
        %v906 = vperm.slane %v904, 0
        %v944 = vunpack.c.l.b16 %v868
        %v945 = vunpack.c.l.b16 %v869
        %v946 = vunpack.c.l.b16 %v870
        %v947 = vunpack.c.l.b16 %v871
        %v948 = vunpack.c.l.b16 %v872
        %v949 = vunpack.c.l.b16 %v873
        %v950 = vunpack.c.l.b16 %v874
        %v951 = vunpack.c.l.b16 %v875
        %v952 = vunpack.c.l.b16 %v876
        %v953 = vunpack.c.l.b16 %v877
        %v954 = vunpack.c.l.b16 %v878
        %v955 = vunpack.c.l.b16 %v879
        %v956 = vunpack.c.l.b16 %v880
        %v957 = vunpack.c.l.b16 %v881
        %v958 = vunpack.c.l.b16 %v882
        %v959 = vunpack.c.l.b16 %v883
        %v960 = vunpack.c.l.b16 %v884
        %v961 = vunpack.c.l.b16 %v885
        %v962 = vunpack.c.l.b16 %v886
        %v963 = vunpack.c.l.b16 %v887
        %v964 = vunpack.c.l.b16 %v888
        %v965 = vunpack.c.l.b16 %v889
        %v966 = vunpack.c.l.b16 %v890
        %v967 = vunpack.c.l.b16 %v891
        %v968 = vunpack.c.l.b16 %v892
        %v969 = vunpack.c.l.b16 %v893
        %v970 = vunpack.c.l.b16 %v894
        %v971 = vunpack.c.l.b16 %v895
        %v972 = vunpack.c.l.b16 %v896
        %v973 = vunpack.c.l.b16 %v897
        %v974 = vunpack.c.l.b16 %v898
        %v975 = vunpack.c.l.b16 %v899
        %v976 = vunpack.c.l.b16 %v900
        %v977 = vunpack.c.l.b16 %v901
        %v978 = vunpack.c.l.b16 %v902
        %v979 = vunpack.c.l.b16 %v903
        %v980 = vpack.c.b16 %v945, %v944
        %v981 = vpack.c.b16 %v947, %v946
        %v982 = vpack.c.b16 %v949, %v948
        %v983 = vpack.c.b16 %v951, %v950
        %v984 = vpack.c.b16 %v953, %v952
        %v985 = vpack.c.b16 %v955, %v954
        %v986 = vpack.c.b16 %v957, %v956
        %v987 = vpack.c.b16 %v959, %v958
        %v988 = vpack.c.b16 %v961, %v960
        %v989 = vpack.c.b16 %v963, %v962
        %v990 = vpack.c.b16 %v965, %v964
        %v991 = vpack.c.b16 %v967, %v966
        %v992 = vpack.c.b16 %v969, %v968
        %v993 = vpack.c.b16 %v971, %v970
        %v994 = vpack.c.b16 %v973, %v972
        %v995 = vpack.c.b16 %v975, %v974
        %v996 = vpack.c.b16 %v977, %v976
        %v997 = vpack.c.b16 %v979, %v978
        %v1017 = vsel %vm708, %v867, 0
        %1019 = vmatpush.bf16.msra.mxu0 %v987
        %1020 = vmatpush.bf16.msra.mxu0 %v986
        %1021 = vmatpush.bf16.msra.mxu0 %v985
        %1022 = vmatpush.bf16.msra.mxu0 %v984
        %1023 = vmatpush.bf16.msra.mxu0 %v983
        %1024 = vmatpush.bf16.msra.mxu0 %v982
        %1025 = vmatpush.bf16.msra.mxu0 %v981
        %1026 = vmatpush.bf16.msra.mxu0 %v980
        %1027 = vmatmul.bf16.gmra.mxu0 %v865
        %v1028 = vpop.f32.mrf.mxu0
        %v1029 = vadd.f32 %v906, %v1028
        %v1030 = vpop.f32.mrf.mxu0
        %v1031 = vadd.f32 %v906, %v1030
        %1032 = vdwg.mxu0
        %1033 = vmatpush.bf16.msra.mxu0 %v995
        %1034 = vmatpush.bf16.msra.mxu0 %v994
        %1035 = vmatpush.bf16.msra.mxu0 %v993
        %1036 = vmatpush.bf16.msra.mxu0 %v992
        %1037 = vmatpush.bf16.msra.mxu0 %v991
        %1038 = vmatpush.bf16.msra.mxu0 %v990
        %1039 = vmatpush.bf16.msra.mxu0 %v989
        %1040 = vmatpush.bf16.msra.mxu0 %v988
        %1041 = vmatmul.bf16.gmra.mxu0 %v866
        %v1042 = vpop.f32.mrf.mxu0
        %v1043 = vadd.f32 %v1029, %v1042
        %v1044 = vpop.f32.mrf.mxu0
        %v1045 = vadd.f32 %v1031, %v1044
        %1046 = vdwg.mxu0
        %1047 = vmatpush.bf16.msra.mxu0 0
        %1048 = vmatpush.bf16.msra.mxu0 0
        %1049 = vmatpush.bf16.msra.mxu0 0
        %1050 = vmatpush.bf16.msra.mxu0 0
        %1051 = vmatpush.bf16.msra.mxu0 0
        %1052 = vmatpush.bf16.msra.mxu0 0
        %1053 = vmatpush.bf16.msra.mxu0 %v997
        %1054 = vmatpush.bf16.msra.mxu0 %v996
        %1055 = vmatmul.bf16.gmra.mxu0 %v1017
        %v1056 = vpop.f32.mrf.mxu0
        %v1057 = vadd.f32 %v1043, %v1056
        %v1058 = vpop.f32.mrf.mxu0
        %v1059 = vadd.f32 %v1045, %v1058
        %1060 = vdwg.mxu0
        %v1061 = vtanh.pop %v1057
        %v1062 = vtanh.pop %v1059
        %v1063 = vld [vmem:[%s7] sm:$0x1]
        %v1064 = vld [vmem:[%s8] sm:$0x1]
        %v1065 = vadd.f32 %v1061, %v1061
        %v1066 = vadd.f32 %v1062, %v1062
        %v1067 = vsel %vm708, %v1065, 0.0
        %1068 = vadd.xlane.f32.xlu0 %v1067
        %v1069 = vpop.xlane.xlu0 %1068
        %vm1070 = vcmask 253952
        %v1071 = vsel %vm1070, %v1066, 0.0
        %1072 = vadd.xlane.f32.xlu0 %v1071
        %v1073 = vpop.xlane.xlu0 %1072
        %v1074 = vrcp.pop 32.0
        %v1075 = vmul.f32 32.0, %v1074
        %v1076 = vsub.f32 1.0, %v1075
        %v1077 = vmul.f32 %v1074, %v1076
        %v1078 = vadd.f32 %v1074, %v1077
        %vm1079 = vweird.f32 %v1074
        %v1080 = vsel %vm1079, %v1074, %v1078
        %v1081 = vmul.f32 %v1069, %v1080
        %v1082 = vmul.f32 %v1073, %v1080
        %v1083 = vsub.f32 %v1065, %v1081
        %v1084 = vsub.f32 %v1066, %v1082
        %v1085 = vmul.f32 %v1083, %v1083
        %v1086 = vmul.f32 %v1084, %v1084
        %v1087 = vsel %vm708, %v1085, 0.0
        %1088 = vadd.xlane.f32.xlu0 %v1087
        %v1089 = vpop.xlane.xlu0 %1088
        %v1090 = vsel %vm1070, %v1086, 0.0
        %1091 = vadd.xlane.f32.xlu0 %v1090
        %v1092 = vpop.xlane.xlu0 %1091
        %v1093 = vmul.f32 %v1089, %v1080
        %v1094 = vmul.f32 %v1092, %v1080
        %v1095 = vadd.f32 %v1093, 1e-05
        %v1096 = vadd.f32 %v1094, 1e-05
        %v1097 = vrsqrt.pop %v1095
        %v1098 = vmul.f32 %v1097, %v1095
        %v1099 = vmul.f32 %v1098, %v1097
        %v1100 = vmul.f32 0.5, %v1099
        %v1101 = vsub.f32 1.5, %v1100
        %v1102 = vmul.f32 %v1097, %v1101
        %vm1103 = vweird.f32 %v1095
        %vm1104 = vweird.f32 %v1097
        %vm1105 = vmor %vm1103, %vm1104
        %v1106 = vsel %vm1105, %v1097, %v1102
        %v1107 = vrsqrt.pop %v1096
        %v1108 = vmul.f32 %v1107, %v1096
        %v1109 = vmul.f32 %v1108, %v1107
        %v1110 = vmul.f32 0.5, %v1109
        %v1111 = vsub.f32 1.5, %v1110
        %v1112 = vmul.f32 %v1107, %v1111
        %vm1113 = vweird.f32 %v1096
        %vm1114 = vweird.f32 %v1107
        %vm1115 = vmor %vm1113, %vm1114
        %v1116 = vsel %vm1115, %v1107, %v1112
        %v1117 = vmul.f32 %v1083, %v1106
        %v1118 = vmul.f32 %v1084, %v1116
        %v1120 = vperm.slane %v1063, 0
        %v1122 = vmul.f32 %v1117, %v1120
        %v1123 = vmul.f32 %v1118, %v1120
        %v1125 = vperm.slane %v1064, 0
        %v1127 = vadd.f32 %v1122, %v1125
        %v1128 = vadd.f32 %v1123, %v1125
        %v1129 = vpack.c.bf16 %v1128, %v1127
        %v1130 = vld [vmem:[%s5] sm:$0xf]
        %v1131 = vld [vmem:[%s5 + $0x4] sm:$0xf]
        %v1132 = vld [vmem:[%s5 + $0x8] sm:$0xf]
        %v1133 = vld [vmem:[%s5 + $0xc] sm:$0xf]
        %v1138 = vunpack.c.l.b16 %v1130
        %v1139 = vunpack.c.l.b16 %v1131
        %v1140 = vunpack.c.l.b16 %v1132
        %v1141 = vunpack.c.l.b16 %v1133
        %v1142 = vpack.c.b16 %v1139, %v1138
        %v1143 = vpack.c.b16 %v1141, %v1140
        %v1147 = vsel %vm708, %v1129, 0
        %1149 = vmatpush.bf16.msra.mxu0 0
        %1150 = vmatpush.bf16.msra.mxu0 0
        %1151 = vmatpush.bf16.msra.mxu0 0
        %1152 = vmatpush.bf16.msra.mxu0 0
        %1153 = vmatpush.bf16.msra.mxu0 0
        %1154 = vmatpush.bf16.msra.mxu0 0
        %1155 = vmatpush.bf16.msra.mxu0 %v1143
        %1156 = vmatpush.bf16.msra.mxu0 %v1142
        %1157 = vmatmul.bf16.gmra.mxu0 %v1147
        %v1158 = vpop.f32.mrf.mxu0
        %v1159 = vadd.f32 0.0, %v1158
        %v1160 = vpop.f32.mrf.mxu0
        %v1161 = vadd.f32 0.0, %v1160
        %1162 = vdwg.mxu0
        %1163 = vst [vmem:[#allocation2] ss:$2 sm:$0xff] %v1159
        %1164 = vst [vmem:[%s714] ss:$2 sm:$0x1] %v1161
        %s1165 = scalar_lea.vmem %s5, 16
        %v1166 = vld [vmem:[%s1165] sm:$0xf]
        %v1167 = vld [vmem:[%s1165 + $0x4] sm:$0xf]
        %v1168 = vld [vmem:[%s1165 + $0x8] sm:$0xf]
        %v1169 = vld [vmem:[%s1165 + $0xc] sm:$0xf]
        %v1174 = vunpack.c.l.b16 %v1166
        %v1175 = vunpack.c.l.b16 %v1167
        %v1176 = vunpack.c.l.b16 %v1168
        %v1177 = vunpack.c.l.b16 %v1169
        %v1178 = vpack.c.b16 %v1175, %v1174
        %v1179 = vpack.c.b16 %v1177, %v1176
        %1182 = vmatpush.bf16.msra.mxu0 0
        %1183 = vmatpush.bf16.msra.mxu0 0
        %1184 = vmatpush.bf16.msra.mxu0 0
        %1185 = vmatpush.bf16.msra.mxu0 0
        %1186 = vmatpush.bf16.msra.mxu0 0
        %1187 = vmatpush.bf16.msra.mxu0 0
        %1188 = vmatpush.bf16.msra.mxu0 %v1179
        %1189 = vmatpush.bf16.msra.mxu0 %v1178
        %1190 = vmatmul.bf16.gmra.mxu0 %v1147
        %v1191 = vpop.f32.mrf.mxu0
        %v1192 = vadd.f32 0.0, %v1191
        %v1193 = vpop.f32.mrf.mxu0
        %v1194 = vadd.f32 0.0, %v1193
        %1195 = vdwg.mxu0
        %1196 = vst [vmem:[%s716] ss:$2 sm:$0xff] %v1192
        %1197 = vst [vmem:[%s718] ss:$2 sm:$0x1] %v1194
        %v1198 = vld [vmem:[#allocation2] sm:$0xff]
        %v1199 = vld [vmem:[#allocation2 + $0x8] sm:$0xff]
        %v1200 = vld [vmem:[%s6] sm:$0x1]
        %v1202 = vperm.slane %v1200, 0
        %v1204 = vadd.f32 %v1198, %v1202
        %v1205 = vadd.f32 %v1199, %v1202
        %v1206 = vtanh.pop %v1204
        %v1207 = vtanh.pop %v1205
        %v1208 = vadd.f32 %v1206, %v696
        %v1209 = vadd.f32 %v1207, %v697
        %v1210 = vsel %vm708, %v1208, 0.0
        %1211 = vadd.xlane.f32.xlu0 %v1210
        %v1212 = vpop.xlane.xlu0 %1211
        %v1213 = vsel %vm708, %v1209, 0.0
        %1214 = vadd.xlane.f32.xlu0 %v1213
        %v1215 = vpop.xlane.xlu0 %1214
        %v1216 = vmul.f32 %v1212, %v1080
        %v1217 = vmul.f32 %v1215, %v1080
        %v1218 = vsub.f32 %v1208, %v1216
        %v1219 = vsub.f32 %v1209, %v1217
        %v1220 = vmul.f32 %v1218, %v1218
        %v1221 = vmul.f32 %v1219, %v1219
        %v1222 = vsel %vm708, %v1220, 0.0
        %1223 = vadd.xlane.f32.xlu0 %v1222
        %v1224 = vpop.xlane.xlu0 %1223
        %v1225 = vsel %vm708, %v1221, 0.0
        %1226 = vadd.xlane.f32.xlu0 %v1225
        %v1227 = vpop.xlane.xlu0 %1226
        %v1228 = vmul.f32 %v1224, %v1080
        %v1229 = vmul.f32 %v1227, %v1080
        %v1230 = vadd.f32 %v1228, 1e-05
        %v1231 = vadd.f32 %v1229, 1e-05
        %v1232 = vrsqrt.pop %v1230
        %v1233 = vmul.f32 %v1232, %v1230
        %v1234 = vmul.f32 %v1233, %v1232
        %v1235 = vmul.f32 0.5, %v1234
        %v1236 = vsub.f32 1.5, %v1235
        %v1237 = vmul.f32 %v1232, %v1236
        %vm1238 = vweird.f32 %v1230
        %vm1239 = vweird.f32 %v1232
        %vm1240 = vmor %vm1238, %vm1239
        %v1241 = vsel %vm1240, %v1232, %v1237
        %v1242 = vrsqrt.pop %v1231
        %v1243 = vmul.f32 %v1242, %v1231
        %v1244 = vmul.f32 %v1243, %v1242
        %v1245 = vmul.f32 0.5, %v1244
        %v1246 = vsub.f32 1.5, %v1245
        %v1247 = vmul.f32 %v1242, %v1246
        %vm1248 = vweird.f32 %v1231
        %vm1249 = vweird.f32 %v1242
        %vm1250 = vmor %vm1248, %vm1249
        %v1251 = vsel %vm1250, %v1242, %v1247
        %v1252 = vmul.f32 %v1218, %v1241
        %v1253 = vmul.f32 %v1219, %v1251
        %v1254 = vmul.f32 %v1252, %v1120
        %v1255 = vmul.f32 %v1253, %v1120
        %v1256 = vadd.f32 %v1254, %v1125
        %v1257 = vadd.f32 %v1255, %v1125
        %v1258 = vpack.c.bf16 %v1257, %v1256
        %v1259 = vld [vmem:[%s9] sm:$0xf]
        %v1260 = vld [vmem:[%s9 + $0x4] sm:$0xf]
        %v1261 = vld [vmem:[%s9 + $0x8] sm:$0xf]
        %v1262 = vld [vmem:[%s9 + $0xc] sm:$0xf]
        %v1263 = vld [vmem:[%s10] sm:$0x1]
        %v1265 = vperm.slane %v1263, 0
        %v1271 = vunpack.c.l.b16 %v1259
        %v1272 = vunpack.c.l.b16 %v1260
        %v1273 = vunpack.c.l.b16 %v1261
        %v1274 = vunpack.c.l.b16 %v1262
        %v1275 = vpack.c.b16 %v1272, %v1271
        %v1276 = vpack.c.b16 %v1274, %v1273
        %v1280 = vsel %vm708, %v1258, 0
        %1282 = vmatpush.bf16.msra.mxu0 0
        %1283 = vmatpush.bf16.msra.mxu0 0
        %1284 = vmatpush.bf16.msra.mxu0 0
        %1285 = vmatpush.bf16.msra.mxu0 0
        %1286 = vmatpush.bf16.msra.mxu0 0
        %1287 = vmatpush.bf16.msra.mxu0 0
        %1288 = vmatpush.bf16.msra.mxu0 %v1276
        %1289 = vmatpush.bf16.msra.mxu0 %v1275
        %1290 = vmatmul.bf16.gmra.mxu0 %v1280
        %v1291 = vpop.f32.mrf.mxu0
        %v1292 = vadd.f32 %v1265, %v1291
        %v1293 = vpop.f32.mrf.mxu0
        %v1294 = vadd.f32 %v1265, %v1293
        %1295 = vdwg.mxu0
        %v1296 = vld [vmem:[%s11] sm:$0x1]
        %v1297 = vld [vmem:[%s12] sm:$0x1]
        %v1298 = vsel %vm708, %v1292, 0.0
        %1299 = vadd.xlane.f32.xlu0 %v1298
        %v1300 = vpop.xlane.xlu0 %1299
        %v1301 = vsel %vm708, %v1294, 0.0
        %1302 = vadd.xlane.f32.xlu0 %v1301
        %v1303 = vpop.xlane.xlu0 %1302
        %v1304 = vmul.f32 %v1300, %v1080
        %v1305 = vmul.f32 %v1303, %v1080
        %v1306 = vsub.f32 %v1292, %v1304
        %v1307 = vsub.f32 %v1294, %v1305
        %v1308 = vmul.f32 %v1306, %v1306
        %v1309 = vmul.f32 %v1307, %v1307
        %v1310 = vsel %vm708, %v1308, 0.0
        %1311 = vadd.xlane.f32.xlu0 %v1310
        %v1312 = vpop.xlane.xlu0 %1311
        %v1313 = vsel %vm708, %v1309, 0.0
        %1314 = vadd.xlane.f32.xlu0 %v1313
        %v1315 = vpop.xlane.xlu0 %1314
        %v1316 = vmul.f32 %v1312, %v1080
        %v1317 = vmul.f32 %v1315, %v1080
        %v1318 = vadd.f32 %v1316, 1e-05
        %v1319 = vadd.f32 %v1317, 1e-05
        %v1320 = vrsqrt.pop %v1318
        %v1321 = vmul.f32 %v1320, %v1318
        %v1322 = vmul.f32 %v1321, %v1320
        %v1323 = vmul.f32 0.5, %v1322
        %v1324 = vsub.f32 1.5, %v1323
        %v1325 = vmul.f32 %v1320, %v1324
        %vm1326 = vweird.f32 %v1318
        %vm1327 = vweird.f32 %v1320
        %vm1328 = vmor %vm1326, %vm1327
        %v1329 = vsel %vm1328, %v1320, %v1325
        %v1330 = vrsqrt.pop %v1319
        %v1331 = vmul.f32 %v1330, %v1319
        %v1332 = vmul.f32 %v1331, %v1330
        %v1333 = vmul.f32 0.5, %v1332
        %v1334 = vsub.f32 1.5, %v1333
        %v1335 = vmul.f32 %v1330, %v1334
        %vm1336 = vweird.f32 %v1319
        %vm1337 = vweird.f32 %v1330
        %vm1338 = vmor %vm1336, %vm1337
        %v1339 = vsel %vm1338, %v1330, %v1335
        %v1340 = vmul.f32 %v1306, %v1329
        %v1341 = vmul.f32 %v1307, %v1339
        %v1343 = vperm.slane %v1296, 0
        %v1345 = vmul.f32 %v1340, %v1343
        %v1346 = vmul.f32 %v1341, %v1343
        %v1348 = vperm.slane %v1297, 0
        %v1350 = vadd.f32 %v1345, %v1348
        %v1351 = vadd.f32 %v1346, %v1348
        %v1352 = vpack.c.bf16 %v1351, %v1350
        %v1353 = vld [vmem:[%s13] sm:$0xf]
        %v1354 = vld [vmem:[%s13 + $0x4] sm:$0xf]
        %v1355 = vld [vmem:[%s13 + $0x8] sm:$0xf]
        %v1356 = vld [vmem:[%s13 + $0xc] sm:$0xf]
        %v1357 = vld [vmem:[%s14] sm:$0x1]
        %v1359 = vperm.slane %v1357, 0
        %v1365 = vunpack.c.l.b16 %v1353
        %v1366 = vunpack.c.l.b16 %v1354
        %v1367 = vunpack.c.l.b16 %v1355
        %v1368 = vunpack.c.l.b16 %v1356
        %v1369 = vpack.c.b16 %v1366, %v1365
        %v1370 = vpack.c.b16 %v1368, %v1367
        %v1374 = vsel %vm708, %v1352, 0
        %1376 = vmatpush.bf16.msra.mxu0 0
        %1377 = vmatpush.bf16.msra.mxu0 0
        %1378 = vmatpush.bf16.msra.mxu0 0
        %1379 = vmatpush.bf16.msra.mxu0 0
        %1380 = vmatpush.bf16.msra.mxu0 0
        %1381 = vmatpush.bf16.msra.mxu0 0
        %1382 = vmatpush.bf16.msra.mxu0 %v1370
        %1383 = vmatpush.bf16.msra.mxu0 %v1369
        %1384 = vmatmul.bf16.gmra.mxu0 %v1374
        %v1385 = vpop.f32.mrf.mxu0
        %v1386 = vadd.f32 %v1359, %v1385
        %v1387 = vpop.f32.mrf.mxu0
        %v1388 = vadd.f32 %v1359, %v1387
        %1389 = vdwg.mxu0
        %v1390 = vpack.c.bf16 %v1388, %v1386
        %v1391 = vld [vmem:[%s15] sm:$0xf]
        %v1392 = vld [vmem:[%s15 + $0x4] sm:$0xf]
        %v1393 = vld [vmem:[%s15 + $0x8] sm:$0xf]
        %v1394 = vld [vmem:[%s15 + $0xc] sm:$0xf]
        %v1395 = vld [vmem:[%s15 + $0x10] sm:$0xf]
        %v1396 = vld [vmem:[%s15 + $0x14] sm:$0xf]
        %v1397 = vld [vmem:[%s15 + $0x18] sm:$0xf]
        %v1398 = vld [vmem:[%s15 + $0x1c] sm:$0xf]
        %v1399 = vld [vmem:[%s15 + $0x20] sm:$0xf]
        %v1400 = vld [vmem:[%s15 + $0x24] sm:$0xf]
        %v1401 = vld [vmem:[%s15 + $0x28] sm:$0xf]
        %v1402 = vld [vmem:[%s15 + $0x2c] sm:$0xf]
        %v1403 = vld [vmem:[%s15 + $0x30] sm:$0xf]
        %v1404 = vld [vmem:[%s15 + $0x34] sm:$0xf]
        %v1405 = vld [vmem:[%s15 + $0x38] sm:$0xf]
        %v1406 = vld [vmem:[%s15 + $0x3c] sm:$0xf]
        %v1407 = vld [vmem:[%s16] sm:$0x1]
        %v1409 = vperm.slane %v1407, 0
        %v1427 = vunpack.c.l.b16 %v1391
        %v1428 = vunpack.c.l.b16 %v1392
        %v1429 = vunpack.c.l.b16 %v1393
        %v1430 = vunpack.c.l.b16 %v1394
        %v1431 = vunpack.c.l.b16 %v1395
        %v1432 = vunpack.c.l.b16 %v1396
        %v1433 = vunpack.c.l.b16 %v1397
        %v1434 = vunpack.c.l.b16 %v1398
        %v1435 = vunpack.c.l.b16 %v1399
        %v1436 = vunpack.c.l.b16 %v1400
        %v1437 = vunpack.c.l.b16 %v1401
        %v1438 = vunpack.c.l.b16 %v1402
        %v1439 = vunpack.c.l.b16 %v1403
        %v1440 = vunpack.c.l.b16 %v1404
        %v1441 = vunpack.c.l.b16 %v1405
        %v1442 = vunpack.c.l.b16 %v1406
        %v1443 = vpack.c.b16 %v1428, %v1427
        %v1444 = vpack.c.b16 %v1430, %v1429
        %v1445 = vpack.c.b16 %v1432, %v1431
        %v1446 = vpack.c.b16 %v1434, %v1433
        %v1447 = vpack.c.b16 %v1436, %v1435
        %v1448 = vpack.c.b16 %v1438, %v1437
        %v1449 = vpack.c.b16 %v1440, %v1439
        %v1450 = vpack.c.b16 %v1442, %v1441
        %1459 = vmatpush.bf16.msra.mxu0 %v1450
        %1460 = vmatpush.bf16.msra.mxu0 %v1449
        %1461 = vmatpush.bf16.msra.mxu0 %v1448
        %1462 = vmatpush.bf16.msra.mxu0 %v1447
        %1463 = vmatpush.bf16.msra.mxu0 %v1446
        %1464 = vmatpush.bf16.msra.mxu0 %v1445
        %1465 = vmatpush.bf16.msra.mxu0 %v1444
        %1466 = vmatpush.bf16.msra.mxu0 %v1443
        %1467 = vmatmul.bf16.gmra.mxu0 %v1390
        %v1468 = vpop.f32.mrf.mxu0
        %v1469 = vadd.f32 %v1409, %v1468
        %v1470 = vpop.f32.mrf.mxu0
        %v1471 = vadd.f32 %v1409, %v1470
        %1472 = vdwg.mxu0
        %v1473 = vadd.f32 %v1292, %v1469
        %v1474 = vadd.f32 %v1294, %v1471
        %v1475 = vld [vmem:[%s17] sm:$0x1]
        %v1476 = vld [vmem:[%s18] sm:$0x1]
        %v1477 = vsel %vm708, %v1473, 0.0
        %1478 = vadd.xlane.f32.xlu0 %v1477
        %v1479 = vpop.xlane.xlu0 %1478
        %v1480 = vsel %vm708, %v1474, 0.0
        %1481 = vadd.xlane.f32.xlu0 %v1480
        %v1482 = vpop.xlane.xlu0 %1481
        %v1483 = vmul.f32 %v1479, %v1080
        %v1484 = vmul.f32 %v1482, %v1080
        %v1485 = vsub.f32 %v1473, %v1483
        %v1486 = vsub.f32 %v1474, %v1484
        %v1487 = vmul.f32 %v1485, %v1485
        %v1488 = vmul.f32 %v1486, %v1486
        %v1489 = vsel %vm708, %v1487, 0.0
        %1490 = vadd.xlane.f32.xlu0 %v1489
        %v1491 = vpop.xlane.xlu0 %1490
        %v1492 = vsel %vm708, %v1488, 0.0
        %1493 = vadd.xlane.f32.xlu0 %v1492
        %v1494 = vpop.xlane.xlu0 %1493
        %v1495 = vmul.f32 %v1491, %v1080
        %v1496 = vmul.f32 %v1494, %v1080
        %v1497 = vadd.f32 %v1495, 1e-05
        %v1498 = vadd.f32 %v1496, 1e-05
        %v1499 = vrsqrt.pop %v1497
        %v1500 = vmul.f32 %v1499, %v1497
        %v1501 = vmul.f32 %v1500, %v1499
        %v1502 = vmul.f32 0.5, %v1501
        %v1503 = vsub.f32 1.5, %v1502
        %v1504 = vmul.f32 %v1499, %v1503
        %vm1505 = vweird.f32 %v1497
        %vm1506 = vweird.f32 %v1499
        %vm1507 = vmor %vm1505, %vm1506
        %v1508 = vsel %vm1507, %v1499, %v1504
        %v1509 = vrsqrt.pop %v1498
        %v1510 = vmul.f32 %v1509, %v1498
        %v1511 = vmul.f32 %v1510, %v1509
        %v1512 = vmul.f32 0.5, %v1511
        %v1513 = vsub.f32 1.5, %v1512
        %v1514 = vmul.f32 %v1509, %v1513
        %vm1515 = vweird.f32 %v1498
        %vm1516 = vweird.f32 %v1509
        %vm1517 = vmor %vm1515, %vm1516
        %v1518 = vsel %vm1517, %v1509, %v1514
        %v1519 = vmul.f32 %v1485, %v1508
        %v1520 = vmul.f32 %v1486, %v1518
        %v1522 = vperm.slane %v1475, 0
        %v1524 = vmul.f32 %v1519, %v1522
        %v1525 = vmul.f32 %v1520, %v1522
        %v1527 = vperm.slane %v1476, 0
        %v1529 = vadd.f32 %v1524, %v1527
        %v1530 = vadd.f32 %v1525, %v1527
        %v1531 = vld [vmem:[%s19] sm:$0x1]
        %v1532 = vld [vmem:[#allocation3] sm:$0x1]
        %1534 = vset.pattern.permute.xlu0 0
        %1535 = vperm.xlu0 %1534, %v1532
        %v1536 = vpop.permute.xlu0 %1535
        %v1538 = vperm.slane %v1536, 0
        %v1540 = vsel %vm708, %v1531, 0
        %v1543 = vsel %vm708, %v1529, 0
        %v1546 = vsel %vm708, %v1530, 0
        %1548 = vmatpush.xpose.msra.mxu0 0.0
        %1549 = vmatpush.xpose.msra.mxu0 0.0
        %1550 = vmatpush.xpose.msra.mxu0 0.0
        %1551 = vmatpush.xpose.msra.mxu0 0.0
        %1552 = vmatpush.xpose.msra.mxu0 0.0
        %1553 = vmatpush.xpose.msra.mxu0 0.0
        %1554 = vmatpush.xpose.msra.mxu0 0.0
        %1555 = vmatpush.xpose.msra.mxu0 0.0
        %1556 = vmatpush.xpose.msra.mxu0 0.0
        %1557 = vmatpush.xpose.msra.mxu0 0.0
        %1558 = vmatpush.xpose.msra.mxu0 0.0
        %1559 = vmatpush.xpose.msra.mxu0 0.0
        %1560 = vmatpush.xpose.msra.mxu0 0.0
        %1561 = vmatpush.xpose.msra.mxu0 0.0
        %1562 = vmatpush.xpose.msra.mxu0 %v1546
        %1563 = vmatpush.xpose.msra.mxu0 %v1543
        %1564 = vmatmul.f32.gmra.mxu0 %v1540
        %v1565 = vpop.f32.mrf.mxu0
        %v1566 = vadd.f32 %v1538, %v1565
        %1567 = vdwg.mxu0
        %vm1568 = vcmask 122880
        %1569 = vst.msk [vmem:[%s650] sm:$0x1] %vm1568, %v1566
        %s1570 = sand.u32 %s491, 1
        %s1571 = scalar_lea.sflag [#allocation5], %s1570
        %s1572 = sand.u32 %s491, 1
        %s1573 = scalar_lea.vmem [#allocation4], %s1572
        // Predicated region
        $region105: #{tpu_custom_call.1} parent=103 // pred_check
          %p1574 = pneg %p501
        $region106: #{tpu_custom_call.1} parent=103 // pred_check_branch
          %1576 = sbr.rel (%p1574) target = $region108
        $region107: #{tpu_custom_call.1} parent=103 // pred_region
          %1578 = vsyncadd %s1571, 0
          %s1579 = scalar_lea.hbm %s21, %s37
          %s1581 = sshll.u32 %s1573, 4
          %s1582 = int_to_ptr.vmem [resolvable:$true] %s1581
          %s1583 = sshll.u32 %s1579, 4
          %s1584 = int_to_ptr.hbm [resolvable:$true] %s1583
          %1586 = dma.vmem_to_hbm [thread:$0]  %s1582, 16, %s1584, %s1571
        $region108: #{tpu_custom_call.1} parent=103 // pred_fallthru
          _
      $region104: #{tpu_custom_call.1} parent=5 // pred_fallthru
        _
      %p1587 = scmp.le.s32.totalorder 2, %s32
      // Predicated region
      $region109: #{tpu_custom_call.1} parent=5 // pred_check
        %p1588 = pneg %p1587
      $region110: #{tpu_custom_call.1} parent=5 // pred_check_branch
        %1590 = sbr.rel (%p1588) target = $region112
      $region111: #{tpu_custom_call.1} parent=5 // pred_region
        %s1591 = ssub.s32 %s32, 2
        // Predicated region
        $region113: #{tpu_custom_call.1} parent=111 // pred_check
          %p1592 = pneg %p507
        $region114: #{tpu_custom_call.1} parent=111 // pred_check_branch
          %1594 = sbr.rel (%p1592) target = $region116
        $region115: #{tpu_custom_call.1} parent=111 // pred_region
          %s1595 = sand.u32 %s492, 1
          %s1596 = scalar_lea.sflag [#allocation5], %s1595
          %s1597 = sand.u32 %s492, 1
          %s1598 = scalar_lea.vmem [#allocation4], %s1597
          %1600 = dma.done %s1596, 16
        $region116: #{tpu_custom_call.1} parent=111 // pred_fallthru
          _
      $region112: #{tpu_custom_call.1} parent=5 // pred_fallthru
        _
    $region6: #{tpu_custom_call.1} parent=1 // loop_footer
      %s36 = sadd.s32 1, %s32
    $region7: #{tpu_custom_call.1} parent=1 // loop_footer_branch
      %31 = sbr.rel target = $region3
    $region8: #{tpu_custom_call.1} parent=1 // loop_exit
      _
    %1601 = vsyncpa [#allocation5], 1
    %s1602 = scalar_lea.sflag [#allocation5], 1
    %1603 = vsyncpa %s1602, 1

</llo_original>
